<compile_context>
chip_gen: v7x
topology: tpu7x:2x2x1
jax: 0.10.0
libtpu: 0.0.40
codegen_flags: <defaults>
</compile_context>

<pallas_src>
import functools

import jax
import jax.numpy as jnp
from jax.experimental import pallas as pl
from jax.experimental.pallas import tpu as pltpu


NEG_SLOPE = 0.01   # nn.LeakyReLU() default negative_slope
LANE = 128
SUBLANE = 8


def _round_up(v, m):
    return (v + m - 1) // m * m


def _fused_leaky_conv3d_kernel(x_ref, w_ref, b_ref, o_ref, act_ref, patch_ref,
                               *, ci, hp, wp, k, nq):
    """One batch element: out = conv3d(leaky_relu(x)) + bias, anchored layout.

    x_ref:     (1, ci, p_in)    f32  zero-padded volume, flat padded spatial on lanes
    w_ref:     (co_pad, k^3*ci) bf16 folded weights, K index = tap*ci + c
    b_ref:     (co_pad, 1)      f32
    o_ref:     (1, co_pad, nq)  f32  conv result at anchor q = (od*hp + oh)*wp + ow
    act_ref:   (ci, p_in)       f32  VMEM scratch: LeakyReLU(x)
    patch_ref: (k^3*ci, nq)     f32  VMEM scratch: im2col patch matrix
    """
    x = x_ref[0]                                         # (ci, p_in), lane-dense
    act_ref[...] = jnp.where(x > 0, x, NEG_SLOPE * x)    # fused LeakyReLU (f32 exact)

    # Build the patch matrix: tap (kd,kh,kw) is a pure lane shift of the flat
    # padded volume by off = (kd*hp + kh)*wp + kw.
    for kd in range(k):
        for kh in range(k):
            for kw in range(k):
                t = (kd * k + kh) * k + kw
                off = (kd * hp + kh) * wp + kw
                patch_ref[pl.ds(t * ci, ci), :] = act_ref[:, pl.ds(off, nq)]

    # Single folded matmul over K = k^3 * ci, bf16 operands -> f32 accumulation,
    # bias folded into the epilogue.
    out = jnp.dot(w_ref[...], patch_ref[...].astype(jnp.bfloat16),
                  preferred_element_type=jnp.float32)
    o_ref[0] = out + b_ref[...]


def output_channel_3d_converter(x, weight, bias):
    """identity(baseModel) -> LeakyReLU -> Conv3d(kernel=3, stride=1, pad=1).

    x:      (N, Cin, D, H, W) f32 (PyTorch NCDHW)
    weight: (Cout, Cin, 3, 3, 3)
    bias:   (Cout,)
    returns (N, Cout, D, H, W)
    """
    n, ci, d, h, w = x.shape
    co = weight.shape[0]
    k = weight.shape[2]
    pad = k // 2                                # module defaults: stride=1, padding=1
    dp, hp, wp = d + 2 * pad, h + 2 * pad, w + 2 * pad
    p_flat = dp * hp * wp                       # flat padded spatial extent
    co_pad = _round_up(co, SUBLANE)             # 8, not 128 (kills 16x output pad)
    nq = _round_up(d * hp * wp, LANE)           # anchored output columns (lane axis)
    max_off = ((k - 1) * hp + (k - 1)) * wp + (k - 1)
    p_in = _round_up(nq + max_off, LANE)        # input lane width incl. shift room
    kk = k * k * k * ci                         # folded contraction dim (108)

    # Glue (fuses into one small XLA pass): conv zero padding + flatten spatial
    # onto the lane axis.  Channels already lead, so no transpose is needed.
    xp = jnp.pad(x, ((0, 0), (0, 0), (pad, pad), (pad, pad), (pad, pad)))
    xp = xp.reshape(n, ci, p_flat)
    xp = jnp.pad(xp, ((0, 0), (0, 0), (0, p_in - p_flat))).astype(jnp.float32)

    # Fold taps into the contraction dim: (Co,Ci,kd,kh,kw) -> (co_pad, k^3*Ci)
    # with K index ((kd*k+kh)*k+kw)*Ci + c, matching the kernel's patch rows.
    w2 = jnp.transpose(weight, (0, 2, 3, 4, 1)).reshape(co, kk)
    w2 = jnp.pad(w2, ((0, co_pad - co), (0, 0))).astype(jnp.bfloat16)
    b2 = jnp.pad(bias, (0, co_pad - co)).reshape(co_pad, 1).astype(jnp.float32)

    kernel = functools.partial(_fused_leaky_conv3d_kernel,
                               ci=ci, hp=hp, wp=wp, k=k, nq=nq)

    flops = 2 * n * co_pad * kk * nq
    bytes_accessed = xp.size * 4 + w2.size * 2 + b2.size * 4 + n * co_pad * nq * 4

    out = pl.pallas_call(
        kernel,
        out_shape=jax.ShapeDtypeStruct((n, co_pad, nq), jnp.float32),
        grid_spec=pltpu.PrefetchScalarGridSpec(
            num_scalar_prefetch=0,
            grid=(n,),
            in_specs=[
                # padded, flattened, lane-dense input slab for this batch element
                pl.BlockSpec((1, ci, p_in), lambda i: (i, 0, 0)),
                # resident folded weights / bias (constant index maps)
                pl.BlockSpec((co_pad, kk), lambda i: (0, 0)),
                pl.BlockSpec((co_pad, 1), lambda i: (0, 0)),
            ],
            out_specs=pl.BlockSpec((1, co_pad, nq), lambda i: (i, 0, 0)),
            scratch_shapes=[
                pltpu.VMEM((ci, p_in), jnp.float32),   # activated slab
                pltpu.VMEM((kk, nq), jnp.float32),     # im2col patch matrix
            ],
        ),
        compiler_params=pltpu.CompilerParams(
            dimension_semantics=("parallel",),         # batch across TCs on v7x
        ),
        cost_estimate=pl.CostEstimate(
            flops=flops, transcendentals=0, bytes_accessed=bytes_accessed),
    )(xp, w2, b2)

    # Decode anchor columns q = (od*hp + oh)*wp + ow back to (D, H, W): just a
    # slice + reshape (no transpose, no channel unpad beyond :co).
    out = out[:, :co, :d * hp * wp].reshape(n, co, d, hp, wp)[:, :, :, :h, :w]
    return out


def _reference(x, weight, bias, *, round_bf16=False):
    """Pure-JAX reference: LeakyReLU -> Conv3d (NCDHW)."""
    xr = jnp.where(x > 0, x, NEG_SLOPE * x)
    wr = weight
    if round_bf16:  # mimic the kernel's bf16 MXU operand rounding
        xr = xr.astype(jnp.bfloat16).astype(jnp.float32)
        wr = wr.astype(jnp.bfloat16).astype(jnp.float32)
    y = jax.lax.conv_general_dilated(
        xr, wr,
        window_strides=(1, 1, 1),
        padding=[(1, 1), (1, 1), (1, 1)],
        dimension_numbers=("NCDHW", "OIDHW", "NCDHW"),
    )
    return y + bias[None, :, None, None, None]


if __name__ == "__main__":
    # Small synthetic shapes consistent with the module's forward.
    N, CIN, COUT = 2, 4, 8
    D = H = W = 8

    key = jax.random.PRNGKey(0)
    kx, kw_, kb = jax.random.split(key, 3)
    x = jax.random.normal(kx, (N, CIN, D, H, W), dtype=jnp.float32)
    weight = 0.05 * jax.random.normal(kw_, (COUT, CIN, 3, 3, 3), dtype=jnp.float32)
    bias = 0.01 * jax.random.normal(kb, (COUT,), dtype=jnp.float32)

    y = jax.block_until_ready(output_channel_3d_converter(x, weight, bias))
    assert y.shape == (N, COUT, D, H, W), y.shape

    # Tight check vs a reference with the same bf16 operand rounding
    # (kernel accumulates in f32, so only summation order differs).
    y_bf = _reference(x, weight, bias, round_bf16=True)
    assert jnp.allclose(y, y_bf, atol=1e-3, rtol=1e-3), \
        float(jnp.max(jnp.abs(y - y_bf)))

    # Looser check vs the pure-f32 module semantics (bf16 MXU feed tolerance).
    y_f32 = _reference(x, weight, bias, round_bf16=False)
    assert jnp.allclose(y, y_f32, atol=2e-2, rtol=2e-2), \
        float(jnp.max(jnp.abs(y - y_f32)))

    print("KERNEL_OK")
</pallas_src>

<mosaic_0001>
module attributes {stable_mosaic.version = 11 : i64} {
  func.func @_fused_leaky_conv3d_kernel(%arg0: i32, %arg1: memref<1x4x1152xf32, #tpu.memory_space<vmem>>, %arg2: memref<8x108xbf16, #tpu.memory_space<vmem>>, %arg3: memref<8x1xf32, #tpu.memory_space<vmem>>, %arg4: memref<1x8x896xf32, #tpu.memory_space<vmem>>, %arg5: memref<4x1152xf32, #tpu.memory_space<vmem>>, %arg6: memref<108x896xf32, #tpu.memory_space<vmem>>) attributes {dimension_semantics = [#tpu.dimension_semantics<parallel>], iteration_bounds = array<i64: 2>, scalar_prefetch = 0 : i64, scratch_operands = 2 : i64, tpu.core_type = #tpu.core_type<tc>, window_params = [{transform_indices = @transform_0, window_bounds = array<i64: 1, 4, 1152>}, {pipeline_mode = #tpu.pipeline_mode<synchronous>, transform_indices = @transform_1, window_bounds = array<i64: 8, 108>}, {pipeline_mode = #tpu.pipeline_mode<synchronous>, transform_indices = @transform_2, window_bounds = array<i64: 8, 1>}, {transform_indices = @transform_3, window_bounds = array<i64: 1, 8, 896>}]} {
    %c0 = arith.constant 0 : index
    %c0_0 = arith.constant 0 : index
    %c0_1 = arith.constant 0 : index
    %0 = vector.load %arg1[%c0, %c0_0, %c0_1] : memref<1x4x1152xf32, #tpu.memory_space<vmem>>, vector<1x4x1152xf32>
    %1 = vector.shape_cast %0 : vector<1x4x1152xf32> to vector<4x1152xf32>
    %cst = arith.constant 0.000000e+00 : f32
    %2 = vector.broadcast %cst : f32 to vector<4x1152xf32>
    %3 = arith.cmpf ogt, %1, %2 : vector<4x1152xf32>
    %cst_2 = arith.constant 0.00999999977 : f32
    %4 = vector.broadcast %cst_2 : f32 to vector<4x1152xf32>
    %5 = arith.mulf %4, %1 : vector<4x1152xf32>
    %6 = arith.select %3, %1, %5 : vector<4x1152xi1>, vector<4x1152xf32>
    %c0_3 = arith.constant 0 : index
    %c0_4 = arith.constant 0 : index
    %7 = vector.load %arg5[%c0_3, %c0_4] : memref<4x1152xf32, #tpu.memory_space<vmem>>, vector<4x1152xf32>
    tpu.vector_store %arg5[%c0_3, %c0_4], %6 {strides = array<i32>} : memref<4x1152xf32, #tpu.memory_space<vmem>>, vector<4x1152xf32>,
    %c0_5 = arith.constant 0 : index
    %c0_6 = arith.constant 0 : index
    %8 = vector.load %arg5[%c0_5, %c0_6] : memref<4x1152xf32, #tpu.memory_space<vmem>>, vector<4x896xf32>
    %c0_7 = arith.constant 0 : index
    %c0_8 = arith.constant 0 : index
    %9 = vector.load %arg6[%c0_7, %c0_8] : memref<108x896xf32, #tpu.memory_space<vmem>>, vector<4x896xf32>
    tpu.vector_store %arg6[%c0_7, %c0_8], %8 {strides = array<i32>} : memref<108x896xf32, #tpu.memory_space<vmem>>, vector<4x896xf32>,
    %c0_9 = arith.constant 0 : index
    %c1 = arith.constant 1 : index
    %10 = vector.load %arg5[%c0_9, %c1] : memref<4x1152xf32, #tpu.memory_space<vmem>>, vector<4x896xf32>
    %c4 = arith.constant 4 : index
    %c0_10 = arith.constant 0 : index
    %11 = vector.load %arg6[%c4, %c0_10] : memref<108x896xf32, #tpu.memory_space<vmem>>, vector<4x896xf32>
    tpu.vector_store %arg6[%c4, %c0_10], %10 {strides = array<i32>} : memref<108x896xf32, #tpu.memory_space<vmem>>, vector<4x896xf32>,
    %c0_11 = arith.constant 0 : index
    %c2 = arith.constant 2 : index
    %12 = vector.load %arg5[%c0_11, %c2] : memref<4x1152xf32, #tpu.memory_space<vmem>>, vector<4x896xf32>
    %c8 = arith.constant 8 : index
    %c0_12 = arith.constant 0 : index
    %13 = vector.load %arg6[%c8, %c0_12] : memref<108x896xf32, #tpu.memory_space<vmem>>, vector<4x896xf32>
    tpu.vector_store %arg6[%c8, %c0_12], %12 {strides = array<i32>} : memref<108x896xf32, #tpu.memory_space<vmem>>, vector<4x896xf32>,
    %c0_13 = arith.constant 0 : index
    %c10 = arith.constant 10 : index
    %14 = vector.load %arg5[%c0_13, %c10] : memref<4x1152xf32, #tpu.memory_space<vmem>>, vector<4x896xf32>
    %c12 = arith.constant 12 : index
    %c0_14 = arith.constant 0 : index
    %15 = vector.load %arg6[%c12, %c0_14] : memref<108x896xf32, #tpu.memory_space<vmem>>, vector<4x896xf32>
    tpu.vector_store %arg6[%c12, %c0_14], %14 {strides = array<i32>} : memref<108x896xf32, #tpu.memory_space<vmem>>, vector<4x896xf32>,
    %c0_15 = arith.constant 0 : index
    %c11 = arith.constant 11 : index
    %16 = vector.load %arg5[%c0_15, %c11] : memref<4x1152xf32, #tpu.memory_space<vmem>>, vector<4x896xf32>
    %c16 = arith.constant 16 : index
    %c0_16 = arith.constant 0 : index
    %17 = vector.load %arg6[%c16, %c0_16] : memref<108x896xf32, #tpu.memory_space<vmem>>, vector<4x896xf32>
    tpu.vector_store %arg6[%c16, %c0_16], %16 {strides = array<i32>} : memref<108x896xf32, #tpu.memory_space<vmem>>, vector<4x896xf32>,
    %c0_17 = arith.constant 0 : index
    %c12_18 = arith.constant 12 : index
    %18 = vector.load %arg5[%c0_17, %c12_18] : memref<4x1152xf32, #tpu.memory_space<vmem>>, vector<4x896xf32>
    %c20 = arith.constant 20 : index
    %c0_19 = arith.constant 0 : index
    %19 = vector.load %arg6[%c20, %c0_19] : memref<108x896xf32, #tpu.memory_space<vmem>>, vector<4x896xf32>
    tpu.vector_store %arg6[%c20, %c0_19], %18 {strides = array<i32>} : memref<108x896xf32, #tpu.memory_space<vmem>>, vector<4x896xf32>,
    %c0_20 = arith.constant 0 : index
    %c20_21 = arith.constant 20 : index
    %20 = vector.load %arg5[%c0_20, %c20_21] : memref<4x1152xf32, #tpu.memory_space<vmem>>, vector<4x896xf32>
    %c24 = arith.constant 24 : index
    %c0_22 = arith.constant 0 : index
    %21 = vector.load %arg6[%c24, %c0_22] : memref<108x896xf32, #tpu.memory_space<vmem>>, vector<4x896xf32>
    tpu.vector_store %arg6[%c24, %c0_22], %20 {strides = array<i32>} : memref<108x896xf32, #tpu.memory_space<vmem>>, vector<4x896xf32>,
    %c0_23 = arith.constant 0 : index
    %c21 = arith.constant 21 : index
    %22 = vector.load %arg5[%c0_23, %c21] : memref<4x1152xf32, #tpu.memory_space<vmem>>, vector<4x896xf32>
    %c28 = arith.constant 28 : index
    %c0_24 = arith.constant 0 : index
    %23 = vector.load %arg6[%c28, %c0_24] : memref<108x896xf32, #tpu.memory_space<vmem>>, vector<4x896xf32>
    tpu.vector_store %arg6[%c28, %c0_24], %22 {strides = array<i32>} : memref<108x896xf32, #tpu.memory_space<vmem>>, vector<4x896xf32>,
    %c0_25 = arith.constant 0 : index
    %c22 = arith.constant 22 : index
    %24 = vector.load %arg5[%c0_25, %c22] : memref<4x1152xf32, #tpu.memory_space<vmem>>, vector<4x896xf32>
    %c32 = arith.constant 32 : index
    %c0_26 = arith.constant 0 : index
    %25 = vector.load %arg6[%c32, %c0_26] : memref<108x896xf32, #tpu.memory_space<vmem>>, vector<4x896xf32>
    tpu.vector_store %arg6[%c32, %c0_26], %24 {strides = array<i32>} : memref<108x896xf32, #tpu.memory_space<vmem>>, vector<4x896xf32>,
    %c0_27 = arith.constant 0 : index
    %c100 = arith.constant 100 : index
    %26 = vector.load %arg5[%c0_27, %c100] : memref<4x1152xf32, #tpu.memory_space<vmem>>, vector<4x896xf32>
    %c36 = arith.constant 36 : index
    %c0_28 = arith.constant 0 : index
    %27 = vector.load %arg6[%c36, %c0_28] : memref<108x896xf32, #tpu.memory_space<vmem>>, vector<4x896xf32>
    tpu.vector_store %arg6[%c36, %c0_28], %26 {strides = array<i32>} : memref<108x896xf32, #tpu.memory_space<vmem>>, vector<4x896xf32>,
    %c0_29 = arith.constant 0 : index
    %c101 = arith.constant 101 : index
    %28 = vector.load %arg5[%c0_29, %c101] : memref<4x1152xf32, #tpu.memory_space<vmem>>, vector<4x896xf32>
    %c40 = arith.constant 40 : index
    %c0_30 = arith.constant 0 : index
    %29 = vector.load %arg6[%c40, %c0_30] : memref<108x896xf32, #tpu.memory_space<vmem>>, vector<4x896xf32>
    tpu.vector_store %arg6[%c40, %c0_30], %28 {strides = array<i32>} : memref<108x896xf32, #tpu.memory_space<vmem>>, vector<4x896xf32>,
    %c0_31 = arith.constant 0 : index
    %c102 = arith.constant 102 : index
    %30 = vector.load %arg5[%c0_31, %c102] : memref<4x1152xf32, #tpu.memory_space<vmem>>, vector<4x896xf32>
    %c44 = arith.constant 44 : index
    %c0_32 = arith.constant 0 : index
    %31 = vector.load %arg6[%c44, %c0_32] : memref<108x896xf32, #tpu.memory_space<vmem>>, vector<4x896xf32>
    tpu.vector_store %arg6[%c44, %c0_32], %30 {strides = array<i32>} : memref<108x896xf32, #tpu.memory_space<vmem>>, vector<4x896xf32>,
    %c0_33 = arith.constant 0 : index
    %c110 = arith.constant 110 : index
    %32 = vector.load %arg5[%c0_33, %c110] : memref<4x1152xf32, #tpu.memory_space<vmem>>, vector<4x896xf32>
    %c48 = arith.constant 48 : index
    %c0_34 = arith.constant 0 : index
    %33 = vector.load %arg6[%c48, %c0_34] : memref<108x896xf32, #tpu.memory_space<vmem>>, vector<4x896xf32>
    tpu.vector_store %arg6[%c48, %c0_34], %32 {strides = array<i32>} : memref<108x896xf32, #tpu.memory_space<vmem>>, vector<4x896xf32>,
    %c0_35 = arith.constant 0 : index
    %c111 = arith.constant 111 : index
    %34 = vector.load %arg5[%c0_35, %c111] : memref<4x1152xf32, #tpu.memory_space<vmem>>, vector<4x896xf32>
    %c52 = arith.constant 52 : index
    %c0_36 = arith.constant 0 : index
    %35 = vector.load %arg6[%c52, %c0_36] : memref<108x896xf32, #tpu.memory_space<vmem>>, vector<4x896xf32>
    tpu.vector_store %arg6[%c52, %c0_36], %34 {strides = array<i32>} : memref<108x896xf32, #tpu.memory_space<vmem>>, vector<4x896xf32>,
    %c0_37 = arith.constant 0 : index
    %c112 = arith.constant 112 : index
    %36 = vector.load %arg5[%c0_37, %c112] : memref<4x1152xf32, #tpu.memory_space<vmem>>, vector<4x896xf32>
    %c56 = arith.constant 56 : index
    %c0_38 = arith.constant 0 : index
    %37 = vector.load %arg6[%c56, %c0_38] : memref<108x896xf32, #tpu.memory_space<vmem>>, vector<4x896xf32>
    tpu.vector_store %arg6[%c56, %c0_38], %36 {strides = array<i32>} : memref<108x896xf32, #tpu.memory_space<vmem>>, vector<4x896xf32>,
    %c0_39 = arith.constant 0 : index
    %c120 = arith.constant 120 : index
    %38 = vector.load %arg5[%c0_39, %c120] : memref<4x1152xf32, #tpu.memory_space<vmem>>, vector<4x896xf32>
    %c60 = arith.constant 60 : index
    %c0_40 = arith.constant 0 : index
    %39 = vector.load %arg6[%c60, %c0_40] : memref<108x896xf32, #tpu.memory_space<vmem>>, vector<4x896xf32>
    tpu.vector_store %arg6[%c60, %c0_40], %38 {strides = array<i32>} : memref<108x896xf32, #tpu.memory_space<vmem>>, vector<4x896xf32>,
    %c0_41 = arith.constant 0 : index
    %c121 = arith.constant 121 : index
    %40 = vector.load %arg5[%c0_41, %c121] : memref<4x1152xf32, #tpu.memory_space<vmem>>, vector<4x896xf32>
    %c64 = arith.constant 64 : index
    %c0_42 = arith.constant 0 : index
    %41 = vector.load %arg6[%c64, %c0_42] : memref<108x896xf32, #tpu.memory_space<vmem>>, vector<4x896xf32>
    tpu.vector_store %arg6[%c64, %c0_42], %40 {strides = array<i32>} : memref<108x896xf32, #tpu.memory_space<vmem>>, vector<4x896xf32>,
    %c0_43 = arith.constant 0 : index
    %c122 = arith.constant 122 : index
    %42 = vector.load %arg5[%c0_43, %c122] : memref<4x1152xf32, #tpu.memory_space<vmem>>, vector<4x896xf32>
    %c68 = arith.constant 68 : index
    %c0_44 = arith.constant 0 : index
    %43 = vector.load %arg6[%c68, %c0_44] : memref<108x896xf32, #tpu.memory_space<vmem>>, vector<4x896xf32>
    tpu.vector_store %arg6[%c68, %c0_44], %42 {strides = array<i32>} : memref<108x896xf32, #tpu.memory_space<vmem>>, vector<4x896xf32>,
    %c0_45 = arith.constant 0 : index
    %c200 = arith.constant 200 : index
    %44 = vector.load %arg5[%c0_45, %c200] : memref<4x1152xf32, #tpu.memory_space<vmem>>, vector<4x896xf32>
    %c72 = arith.constant 72 : index
    %c0_46 = arith.constant 0 : index
    %45 = vector.load %arg6[%c72, %c0_46] : memref<108x896xf32, #tpu.memory_space<vmem>>, vector<4x896xf32>
    tpu.vector_store %arg6[%c72, %c0_46], %44 {strides = array<i32>} : memref<108x896xf32, #tpu.memory_space<vmem>>, vector<4x896xf32>,
    %c0_47 = arith.constant 0 : index
    %c201 = arith.constant 201 : index
    %46 = vector.load %arg5[%c0_47, %c201] : memref<4x1152xf32, #tpu.memory_space<vmem>>, vector<4x896xf32>
    %c76 = arith.constant 76 : index
    %c0_48 = arith.constant 0 : index
    %47 = vector.load %arg6[%c76, %c0_48] : memref<108x896xf32, #tpu.memory_space<vmem>>, vector<4x896xf32>
    tpu.vector_store %arg6[%c76, %c0_48], %46 {strides = array<i32>} : memref<108x896xf32, #tpu.memory_space<vmem>>, vector<4x896xf32>,
    %c0_49 = arith.constant 0 : index
    %c202 = arith.constant 202 : index
    %48 = vector.load %arg5[%c0_49, %c202] : memref<4x1152xf32, #tpu.memory_space<vmem>>, vector<4x896xf32>
    %c80 = arith.constant 80 : index
    %c0_50 = arith.constant 0 : index
    %49 = vector.load %arg6[%c80, %c0_50] : memref<108x896xf32, #tpu.memory_space<vmem>>, vector<4x896xf32>
    tpu.vector_store %arg6[%c80, %c0_50], %48 {strides = array<i32>} : memref<108x896xf32, #tpu.memory_space<vmem>>, vector<4x896xf32>,
    %c0_51 = arith.constant 0 : index
    %c210 = arith.constant 210 : index
    %50 = vector.load %arg5[%c0_51, %c210] : memref<4x1152xf32, #tpu.memory_space<vmem>>, vector<4x896xf32>
    %c84 = arith.constant 84 : index
    %c0_52 = arith.constant 0 : index
    %51 = vector.load %arg6[%c84, %c0_52] : memref<108x896xf32, #tpu.memory_space<vmem>>, vector<4x896xf32>
    tpu.vector_store %arg6[%c84, %c0_52], %50 {strides = array<i32>} : memref<108x896xf32, #tpu.memory_space<vmem>>, vector<4x896xf32>,
    %c0_53 = arith.constant 0 : index
    %c211 = arith.constant 211 : index
    %52 = vector.load %arg5[%c0_53, %c211] : memref<4x1152xf32, #tpu.memory_space<vmem>>, vector<4x896xf32>
    %c88 = arith.constant 88 : index
    %c0_54 = arith.constant 0 : index
    %53 = vector.load %arg6[%c88, %c0_54] : memref<108x896xf32, #tpu.memory_space<vmem>>, vector<4x896xf32>
    tpu.vector_store %arg6[%c88, %c0_54], %52 {strides = array<i32>} : memref<108x896xf32, #tpu.memory_space<vmem>>, vector<4x896xf32>,
    %c0_55 = arith.constant 0 : index
    %c212 = arith.constant 212 : index
    %54 = vector.load %arg5[%c0_55, %c212] : memref<4x1152xf32, #tpu.memory_space<vmem>>, vector<4x896xf32>
    %c92 = arith.constant 92 : index
    %c0_56 = arith.constant 0 : index
    %55 = vector.load %arg6[%c92, %c0_56] : memref<108x896xf32, #tpu.memory_space<vmem>>, vector<4x896xf32>
    tpu.vector_store %arg6[%c92, %c0_56], %54 {strides = array<i32>} : memref<108x896xf32, #tpu.memory_space<vmem>>, vector<4x896xf32>,
    %c0_57 = arith.constant 0 : index
    %c220 = arith.constant 220 : index
    %56 = vector.load %arg5[%c0_57, %c220] : memref<4x1152xf32, #tpu.memory_space<vmem>>, vector<4x896xf32>
    %c96 = arith.constant 96 : index
    %c0_58 = arith.constant 0 : index
    %57 = vector.load %arg6[%c96, %c0_58] : memref<108x896xf32, #tpu.memory_space<vmem>>, vector<4x896xf32>
    tpu.vector_store %arg6[%c96, %c0_58], %56 {strides = array<i32>} : memref<108x896xf32, #tpu.memory_space<vmem>>, vector<4x896xf32>,
    %c0_59 = arith.constant 0 : index
    %c221 = arith.constant 221 : index
    %58 = vector.load %arg5[%c0_59, %c221] : memref<4x1152xf32, #tpu.memory_space<vmem>>, vector<4x896xf32>
    %c100_60 = arith.constant 100 : index
    %c0_61 = arith.constant 0 : index
    %59 = vector.load %arg6[%c100_60, %c0_61] : memref<108x896xf32, #tpu.memory_space<vmem>>, vector<4x896xf32>
    tpu.vector_store %arg6[%c100_60, %c0_61], %58 {strides = array<i32>} : memref<108x896xf32, #tpu.memory_space<vmem>>, vector<4x896xf32>,
    %c0_62 = arith.constant 0 : index
    %c222 = arith.constant 222 : index
    %60 = vector.load %arg5[%c0_62, %c222] : memref<4x1152xf32, #tpu.memory_space<vmem>>, vector<4x896xf32>
    %c104 = arith.constant 104 : index
    %c0_63 = arith.constant 0 : index
    %61 = vector.load %arg6[%c104, %c0_63] : memref<108x896xf32, #tpu.memory_space<vmem>>, vector<4x896xf32>
    tpu.vector_store %arg6[%c104, %c0_63], %60 {strides = array<i32>} : memref<108x896xf32, #tpu.memory_space<vmem>>, vector<4x896xf32>,
    %c0_64 = arith.constant 0 : index
    %c0_65 = arith.constant 0 : index
    %62 = vector.load %arg2[%c0_64, %c0_65] : memref<8x108xbf16, #tpu.memory_space<vmem>>, vector<8x108xbf16>
    %c0_66 = arith.constant 0 : index
    %c0_67 = arith.constant 0 : index
    %63 = vector.load %arg6[%c0_66, %c0_67] : memref<108x896xf32, #tpu.memory_space<vmem>>, vector<108x896xf32>
    %64 = arith.truncf %63 : vector<108x896xf32> to vector<108x896xbf16>
    %cst_68 = arith.constant dense<0.000000e+00> : vector<8x896xf32>
    %65 = tpu.matmul %62, %64, %cst_68 {dimension_numbers = #tpu.dot_dimension_numbers<[1], [0], [0], [1], [0, 0, 1, 1], [], []>} : vector<8x108xbf16>, vector<108x896xbf16>, vector<8x896xf32> -> vector<8x896xf32>
    %c0_69 = arith.constant 0 : index
    %c0_70 = arith.constant 0 : index
    %66 = vector.load %arg3[%c0_69, %c0_70] : memref<8x1xf32, #tpu.memory_space<vmem>>, vector<8x1xf32>
    %67 = vector.broadcast %66 : vector<8x1xf32> to vector<8x896xf32>
    %68 = arith.addf %65, %67 : vector<8x896xf32>
    %c0_71 = arith.constant 0 : index
    %c0_72 = arith.constant 0 : index
    %c0_73 = arith.constant 0 : index
    %69 = vector.load %arg4[%c0_71, %c0_72, %c0_73] : memref<1x8x896xf32, #tpu.memory_space<vmem>>, vector<1x8x896xf32>
    %70 = vector.shape_cast %69 : vector<1x8x896xf32> to vector<8x896xf32>
    %71 = vector.shape_cast %68 : vector<8x896xf32> to vector<1x8x896xf32>
    tpu.vector_store %arg4[%c0_71, %c0_72, %c0_73], %71 {strides = array<i32>} : memref<1x8x896xf32, #tpu.memory_space<vmem>>, vector<1x8x896xf32>,
    return
  }
  func.func @transform_0(%arg0: i32) -> (i32, i32, i32) {
    %c0_i32 = arith.constant 0 : i32
    %c0_i32_0 = arith.constant 0 : i32
    %c0_i32_1 = arith.constant 0 : i32
    return %arg0, %c0_i32, %c0_i32_0 : i32, i32, i32
  }
  func.func @transform_1(%arg0: i32) -> (i32, i32) {
    %c0_i32 = arith.constant 0 : i32
    %c0_i32_0 = arith.constant 0 : i32
    %c0_i32_1 = arith.constant 0 : i32
    return %c0_i32, %c0_i32_0 : i32, i32
  }
  func.func @transform_2(%arg0: i32) -> (i32, i32) {
    %c0_i32 = arith.constant 0 : i32
    %c0_i32_0 = arith.constant 0 : i32
    %c0_i32_1 = arith.constant 0 : i32
    return %c0_i32, %c0_i32_0 : i32, i32
  }
  func.func @transform_3(%arg0: i32) -> (i32, i32, i32) {
    %c0_i32 = arith.constant 0 : i32
    %c0_i32_0 = arith.constant 0 : i32
    %c0_i32_1 = arith.constant 0 : i32
    return %arg0, %c0_i32, %c0_i32_0 : i32, i32, i32
  }
}

</mosaic_0001>

<llo_original>
// kernel: tpu_custom_call.1
$region0: #{tpu_custom_call.1}
  #allocation0 [shape = 'u32[]', space=smem, size = 0x4, offset = 0x4, fixed_abs, tag = 'smem constant byte address 0x4 - core index']
  #allocation1 [shape = 'u32[144,128]{1,0:T(1,128)}', space=vmem, size = 0x12000, scoped, tag = 'internal scratch']
  #allocation2 [shape = 'f32[4,1152]{1,0:T(4,128)}', space=vmem, size = 0x4800, scoped, tag = 'scratch operand']
  #allocation3 [shape = 'f32[108,896]{1,0:T(8,128)}', space=vmem, size = 0x62000, scoped, tag = 'scratch operand']
  %s0 = inlined_call_operand.hbm [shape: f32[2,4,1152], index: 0, kind: input, shape index: {}]
  %s1 = inlined_call_operand.vmem [shape: bf16[8,108], index: 1, kind: input, shape index: {}]
  %s2 = inlined_call_operand.vmem [shape: f32[8,1], index: 2, kind: input, shape index: {}]
  %s3 = inlined_call_operand.hbm [shape: f32[2,8,896], index: 3, kind: output, shape index: {}]
  %s4 = sld [smem:[#allocation0]]
  $region49: #{tpu_custom_call.1} parent=0
    _
  %s6 = ssub.s32 1, %s4
  %s7 = scalar_select 0, %s6, %s4
  $region1: #{tpu_custom_call.1} parent=0
    #allocation4 [shape = 'u8[36864]{0}', space=vmem, size = 0x9000, scoped, tag = 'input window, operand 0']
    #allocation5 [shape = 's32[2]{0}', space=sflag, size = 0x8, scoped, tag = 'scoped memory for tpu_custom_call.1']
    #allocation6 [shape = 's32[2]{0}', space=sflag, size = 0x8, scoped, tag = 'scoped memory for tpu_custom_call.1']
    #allocation7 [shape = 'u8[57344]{0}', space=vmem, size = 0xe000, scoped, tag = 'output window, operand 0']
    %8 = vsyncpa [#allocation5], 0
    %s9 = scalar_lea.sflag [#allocation5], 1
    %10 = vsyncpa %s9, 0
    %11 = vsyncpa [#allocation6], 0
    %s12 = scalar_lea.sflag [#allocation6], 1
    %13 = vsyncpa %s12, 0
    loop: start=0, step=1, limit=4
    $region2: #{tpu_custom_call.1} parent=1 // loop_pre_header
      _
    $region3: #{tpu_custom_call.1} parent=1 // loop_header
      %s15 = sphi 0, %s19
      %p16 = scmp.ge.s32.totalorder %s15, 4
      %s25 = sphi 0, %s27
      %s28 = sphi 0, %s25
      %s29 = sphi 0, %s28
      %s45 = sphi 0, %s29
      %s49 = sphi 0, %s49
      %s51 = sphi 0, %s49
      %s52 = sphi 0, %s51
      %s66 = sphi 0, %s52
      %s70 = sphi 0, %s70
      %s72 = sphi 0, %s70
      %s73 = sphi 0, %s72
      %s87 = sphi 0, %s73
      %s93 = sphi 0, %s95
      %s96 = sphi 0, %s93
      %s97 = sphi 0, %s96
      %s113 = sphi 0, %s97
    $region4: #{tpu_custom_call.1} parent=1 // loop_header_branch
      %18 = sbr.rel (%p16) target = $region8
    $region5: #{tpu_custom_call.1} parent=1 // loop_body
      %s20 = ssub.s32 %s15, 1
      %s21 = ssub.s32 %s15, 2
      %s22 = sadd.s32 %s15, 1
      %s23 = ssub.s32 %s15, %s22
      %p24 = scmp.eq.s32.totalorder %s23, 0
      %s26 = sadd.s32 %s25, 1
      %s27 = scalar_select %p24, %s25, %s26
      %p30 = pneg %p24
      %p31 = scmp.eq.s32.totalorder %s15, 1
      %p32 = por %p30, %p31
      %p33 = scmp.ne.s32.totalorder %s25, %s28
      %p34 = scmp.eq.s32.totalorder %s15, 0
      %p35 = por %p33, %p34
      %p36 = scmp.ne.s32.totalorder %s25, %s28
      %p37 = scmp.eq.s32.totalorder %s20, 1
      %p38 = por %p36, %p37
      %p39 = scmp.ne.s32.totalorder %s28, %s29
      %p40 = scmp.eq.s32.totalorder %s20, 0
      %p41 = por %p39, %p40
      %p42 = scmp.ne.s32.totalorder %s28, %s29
      %p43 = scmp.eq.s32.totalorder %s21, 1
      %p44 = por %p42, %p43
      %p46 = scmp.ne.s32.totalorder %s29, %s45
      %p47 = scmp.eq.s32.totalorder %s21, 0
      %p48 = por %p46, %p47
      %s50 = sadd.s32 %s49, 1
      %p53 = scmp.eq.s32.totalorder %s15, 1
      %p54 = scmp.ne.s32.totalorder %s49, %s51
      %p55 = scmp.eq.s32.totalorder %s15, 0
      %p56 = por %p54, %p55
      %p57 = scmp.ne.s32.totalorder %s49, %s51
      %p58 = scmp.eq.s32.totalorder %s20, 1
      %p59 = por %p57, %p58
      %p60 = scmp.ne.s32.totalorder %s51, %s52
      %p61 = scmp.eq.s32.totalorder %s20, 0
      %p62 = por %p60, %p61
      %p63 = scmp.ne.s32.totalorder %s51, %s52
      %p64 = scmp.eq.s32.totalorder %s21, 1
      %p65 = por %p63, %p64
      %p67 = scmp.ne.s32.totalorder %s52, %s66
      %p68 = scmp.eq.s32.totalorder %s21, 0
      %p69 = por %p67, %p68
      %s71 = sadd.s32 %s70, 1
      %p74 = scmp.eq.s32.totalorder %s15, 1
      %p75 = scmp.ne.s32.totalorder %s70, %s72
      %p76 = scmp.eq.s32.totalorder %s15, 0
      %p77 = por %p75, %p76
      %p78 = scmp.ne.s32.totalorder %s70, %s72
      %p79 = scmp.eq.s32.totalorder %s20, 1
      %p80 = por %p78, %p79
      %p81 = scmp.ne.s32.totalorder %s72, %s73
      %p82 = scmp.eq.s32.totalorder %s20, 0
      %p83 = por %p81, %p82
      %p84 = scmp.ne.s32.totalorder %s72, %s73
      %p85 = scmp.eq.s32.totalorder %s21, 1
      %p86 = por %p84, %p85
      %p88 = scmp.ne.s32.totalorder %s73, %s87
      %p89 = scmp.eq.s32.totalorder %s21, 0
      %p90 = por %p88, %p89
      %s91 = ssub.s32 %s15, %s22
      %p92 = scmp.eq.s32.totalorder %s91, 0
      %s94 = sadd.s32 %s93, 1
      %s95 = scalar_select %p92, %s93, %s94
      %p98 = pneg %p92
      %p99 = scmp.eq.s32.totalorder %s15, 1
      %p100 = por %p98, %p99
      %p101 = scmp.ne.s32.totalorder %s93, %s96
      %p102 = scmp.eq.s32.totalorder %s15, 0
      %p103 = por %p101, %p102
      %p104 = scmp.ne.s32.totalorder %s93, %s96
      %p105 = scmp.eq.s32.totalorder %s20, 1
      %p106 = por %p104, %p105
      %p107 = scmp.ne.s32.totalorder %s96, %s97
      %p108 = scmp.eq.s32.totalorder %s20, 0
      %p109 = por %p107, %p108
      %p110 = scmp.ne.s32.totalorder %s96, %s97
      %p111 = scmp.eq.s32.totalorder %s21, 1
      %p112 = por %p110, %p111
      %p114 = scmp.ne.s32.totalorder %s97, %s113
      %p115 = scmp.eq.s32.totalorder %s21, 0
      %p116 = por %p114, %p115
      %p117 = scmp.le.s32.totalorder 1, %s15
      %p118 = scmp.lt.s32.totalorder %s15, 3
      %p119 = pnand %p117, %p118
      %p120 = pneg %p119
      // Predicated region
      $region9: #{tpu_custom_call.1} parent=5 // pred_check
        _
      $region10: #{tpu_custom_call.1} parent=5 // pred_check_branch
        %122 = sbr.rel (%p119) target = $region12
      $region11: #{tpu_custom_call.1} parent=5 // pred_region
        %s123 = ssub.s32 %s15, 1
        // Predicated region
        $region13: #{tpu_custom_call.1} parent=11 // pred_check
          %p124 = pneg %p62
        $region14: #{tpu_custom_call.1} parent=11 // pred_check_branch
          %126 = sbr.rel (%p124) target = $region16
        $region15: #{tpu_custom_call.1} parent=11 // pred_region
          _
        $region16: #{tpu_custom_call.1} parent=11 // pred_fallthru
          _
        // Predicated region
        $region17: #{tpu_custom_call.1} parent=11 // pred_check
          %p127 = pneg %p83
        $region18: #{tpu_custom_call.1} parent=11 // pred_check_branch
          %129 = sbr.rel (%p127) target = $region20
        $region19: #{tpu_custom_call.1} parent=11 // pred_region
          _
        $region20: #{tpu_custom_call.1} parent=11 // pred_fallthru
          _
      $region12: #{tpu_custom_call.1} parent=5 // pred_fallthru
        _
      %p130 = scmp.lt.s32.totalorder %s15, 2
      // Predicated region
      $region21: #{tpu_custom_call.1} parent=5 // pred_check
        %p131 = pneg %p130
      $region22: #{tpu_custom_call.1} parent=5 // pred_check_branch
        %133 = sbr.rel (%p131) target = $region24
      $region23: #{tpu_custom_call.1} parent=5 // pred_region
        // Predicated region
        $region25: #{tpu_custom_call.1} parent=23 // pred_check
          %p134 = pneg %p35
        $region26: #{tpu_custom_call.1} parent=23 // pred_check_branch
          %136 = sbr.rel (%p134) target = $region28
        $region27: #{tpu_custom_call.1} parent=23 // pred_region
          %s137 = sand.u32 %s25, 1
          %s138 = scalar_lea.sflag [#allocation5], %s137
          %s139 = sand.u32 %s25, 1
          %s140 = smul.addr %s139, 36
          %s141 = scalar_lea.vmem [#allocation4], %s140
          %s143 = ssub.s32 576, 576
          %144 = vsyncadd %s138, %s143
          %s145 = smul.addr %s15, 9
          %s146 = smul.addr %s145, 64
          %s147 = scalar_lea.hbm %s0, %s146
          %s149 = sshll.u32 %s141, 4
          %s150 = int_to_ptr.vmem [resolvable:$true] %s149
          %152 = dma.hbm_to_vmem [thread:$0]  %s147, 576, %s150, %s138
        $region28: #{tpu_custom_call.1} parent=23 // pred_fallthru
          _
      $region24: #{tpu_custom_call.1} parent=5 // pred_fallthru
        _
      %p153 = scmp.le.s32.totalorder 1, %s15
      %p154 = scmp.lt.s32.totalorder %s15, 3
      %p155 = pnand %p153, %p154
      %p156 = pneg %p155
      // Predicated region
      $region29: #{tpu_custom_call.1} parent=5 // pred_check
        _
      $region30: #{tpu_custom_call.1} parent=5 // pred_check_branch
        %158 = sbr.rel (%p155) target = $region32
      $region31: #{tpu_custom_call.1} parent=5 // pred_region
        %s159 = ssub.s32 %s15, 1
        %s160 = sand.u32 %s28, 1
        %s161 = scalar_lea.sflag [#allocation5], %s160
        %s162 = sand.u32 %s28, 1
        %s163 = smul.addr %s162, 36
        %s164 = scalar_lea.vmem [#allocation4], %s163
        // Predicated region
        $region33: #{tpu_custom_call.1} parent=31 // pred_check
          %p165 = pneg %p41
        $region34: #{tpu_custom_call.1} parent=31 // pred_check_branch
          %167 = sbr.rel (%p165) target = $region36
        $region35: #{tpu_custom_call.1} parent=31 // pred_region
          %168 = dma.done %s161, 576
        $region36: #{tpu_custom_call.1} parent=31 // pred_fallthru
          _
        %s169 = sand.u32 %s28, 1
        %s170 = scalar_lea.sflag [#allocation5], %s169
        %s171 = sand.u32 %s28, 1
        %s172 = smul.addr %s171, 36
        %s173 = scalar_lea.vmem [#allocation4], %s172
        %p174 = pneg %p41
        %p175 = pneg %p38
        %p176 = pneg %p62
        %p177 = pneg %p59
        %p178 = pneg %p83
        %p179 = pneg %p80
        %p180 = pneg %p109
        %p181 = pneg %p106
        %s182 = sand.u32 %s96, 1
        %s183 = scalar_lea.sflag [#allocation6], %s182
        %s184 = sand.u32 %s96, 1
        %s185 = smul.addr %s184, 56
        %s186 = scalar_lea.vmem [#allocation7], %s185
        %v188 = vld [vmem:[%s164] sm:$0xff]
        %v189 = vld [vmem:[%s164 + $0x8] sm:$0xff]
        %v190 = vld [vmem:[%s164 + $0x10] sm:$0xff]
        %v191 = vld [vmem:[%s164 + $0x18] sm:$0xff]
        %v192 = vld [vmem:[%s164 + $0x20] sm:$0xf]
        %vm193 = vcmp.gt.f32.partialorder %v188, 0.0
        %vm194 = vcmp.gt.f32.partialorder %v189, 0.0
        %vm195 = vcmp.gt.f32.partialorder %v190, 0.0
        %vm196 = vcmp.gt.f32.partialorder %v191, 0.0
        %vm197 = vcmp.gt.f32.partialorder %v192, 0.0
        %v198 = vmul.f32 %v188, 0.01
        %v199 = vmul.f32 %v189, 0.01
        %v200 = vmul.f32 %v190, 0.01
        %v201 = vmul.f32 %v191, 0.01
        %v202 = vmul.f32 %v192, 0.01
        %v203 = vsel %vm193, %v188, %v198
        %v204 = vsel %vm194, %v189, %v199
        %v205 = vsel %vm195, %v190, %v200
        %v206 = vsel %vm196, %v191, %v201
        %v207 = vsel %vm197, %v192, %v202
        %208 = vst [vmem:[#allocation2] sm:$0xff] %v203
        %209 = vst [vmem:[#allocation2 + $0x8] sm:$0xff] %v204
        %210 = vst [vmem:[#allocation2 + $0x10] sm:$0xff] %v205
        %211 = vst [vmem:[#allocation2 + $0x18] sm:$0xff] %v206
        %212 = vst [vmem:[#allocation2 + $0x20] sm:$0xf] %v207
        %v213 = vld [vmem:[#allocation2] sm:$0xff]
        %v214 = vld [vmem:[#allocation2 + $0x8] sm:$0xff]
        %v215 = vld [vmem:[#allocation2 + $0x10] sm:$0xff]
        %v216 = vld [vmem:[#allocation2 + $0x18] sm:$0xf]
        %v220 = vcombine.high %v213, %v213
        %v221 = vcombine.high %v214, %v214
        %v222 = vcombine.high %v215, %v215
        %226 = vst [vmem:[#allocation3] sm:$0xf] %v213
        %227 = vst [vmem:[#allocation3 + $0x8] sm:$0xf] %v220
        %228 = vst [vmem:[#allocation3 + $0x10] sm:$0xf] %v214
        %229 = vst [vmem:[#allocation3 + $0x18] sm:$0xf] %v221
        %230 = vst [vmem:[#allocation3 + $0x20] sm:$0xf] %v215
        %231 = vst [vmem:[#allocation3 + $0x28] sm:$0xf] %v222
        %232 = vst [vmem:[#allocation3 + $0x30] sm:$0xf] %v216
        %v233 = vld [vmem:[#allocation2] sm:$0xff]
        %v234 = vld [vmem:[#allocation2 + $0x8] sm:$0xff]
        %v235 = vld [vmem:[#allocation2 + $0x10] sm:$0xff]
        %v236 = vld [vmem:[#allocation2 + $0x18] sm:$0xff]
        %v241 = vcombine.low %v233, %v233
        %v242 = vcombine.low %v234, %v234
        %v243 = vcombine.low %v235, %v235
        %v244 = vcombine.low %v236, %v236
        %245 = vrot.lane.b32.xlu0 %v241, 127
        %v246 = vpop.permute.xlu0 %245
        %247 = vrot.lane.b32.xlu0 %v233, 127
        %v248 = vpop.permute.xlu0 %247
        %249 = vrot.lane.b32.xlu0 %v242, 127
        %v250 = vpop.permute.xlu0 %249
        %251 = vrot.lane.b32.xlu0 %v234, 127
        %v252 = vpop.permute.xlu0 %251
        %253 = vrot.lane.b32.xlu0 %v243, 127
        %v254 = vpop.permute.xlu0 %253
        %255 = vrot.lane.b32.xlu0 %v235, 127
        %v256 = vpop.permute.xlu0 %255
        %257 = vrot.lane.b32.xlu0 %v244, 127
        %v258 = vpop.permute.xlu0 %257
        %259 = vrot.lane.b32.xlu0 %v236, 127
        %v260 = vpop.permute.xlu0 %259
        %vm261 = vcmask 1039360
        %v262 = vsel %vm261, %v246, %v248
        %v263 = vsel %vm261, %v248, %v250
        %v264 = vsel %vm261, %v250, %v252
        %v265 = vsel %vm261, %v252, %v254
        %v266 = vsel %vm261, %v254, %v256
        %v267 = vsel %vm261, %v256, %v258
        %v268 = vsel %vm261, %v258, %v260
        %276 = vst [vmem:[#allocation3] sm:$0xf0] %v262
        %277 = vst [vmem:[#allocation3 + $0x8] sm:$0xf0] %v263
        %278 = vst [vmem:[#allocation3 + $0x10] sm:$0xf0] %v264
        %279 = vst [vmem:[#allocation3 + $0x18] sm:$0xf0] %v265
        %280 = vst [vmem:[#allocation3 + $0x20] sm:$0xf0] %v266
        %281 = vst [vmem:[#allocation3 + $0x28] sm:$0xf0] %v267
        %282 = vst [vmem:[#allocation3 + $0x30] sm:$0xf0] %v268
        %v283 = vld [vmem:[#allocation2] sm:$0xff]
        %v284 = vld [vmem:[#allocation2 + $0x8] sm:$0xff]
        %v285 = vld [vmem:[#allocation2 + $0x10] sm:$0xff]
        %v286 = vld [vmem:[#allocation2 + $0x18] sm:$0xff]
        %v291 = vcombine.high %v283, %v283
        %v292 = vcombine.high %v284, %v284
        %v293 = vcombine.high %v285, %v285
        %v294 = vcombine.high %v286, %v286
        %295 = vrot.lane.b32.xlu0 %v283, 126
        %v296 = vpop.permute.xlu0 %295
        %297 = vrot.lane.b32.xlu0 %v291, 126
        %v298 = vpop.permute.xlu0 %297
        %299 = vrot.lane.b32.xlu0 %v284, 126
        %v300 = vpop.permute.xlu0 %299
        %301 = vrot.lane.b32.xlu0 %v292, 126
        %v302 = vpop.permute.xlu0 %301
        %303 = vrot.lane.b32.xlu0 %v285, 126
        %v304 = vpop.permute.xlu0 %303
        %305 = vrot.lane.b32.xlu0 %v293, 126
        %v306 = vpop.permute.xlu0 %305
        %307 = vrot.lane.b32.xlu0 %v286, 126
        %v308 = vpop.permute.xlu0 %307
        %309 = vrot.lane.b32.xlu0 %v294, 126
        %v310 = vpop.permute.xlu0 %309
        %vm311 = vcmask 1031168
        %v312 = vsel %vm311, %v296, %v298
        %v313 = vsel %vm311, %v298, %v300
        %v314 = vsel %vm311, %v300, %v302
        %v315 = vsel %vm311, %v302, %v304
        %v316 = vsel %vm311, %v304, %v306
        %v317 = vsel %vm311, %v306, %v308
        %v318 = vsel %vm311, %v308, %v310
        %326 = vst [vmem:[#allocation3 + $0x38] sm:$0xf] %v312
        %327 = vst [vmem:[#allocation3 + $0x40] sm:$0xf] %v313
        %328 = vst [vmem:[#allocation3 + $0x48] sm:$0xf] %v314
        %329 = vst [vmem:[#allocation3 + $0x50] sm:$0xf] %v315
        %330 = vst [vmem:[#allocation3 + $0x58] sm:$0xf] %v316
        %331 = vst [vmem:[#allocation3 + $0x60] sm:$0xf] %v317
        %332 = vst [vmem:[#allocation3 + $0x68] sm:$0xf] %v318
        %v333 = vld [vmem:[#allocation2] sm:$0xff]
        %v334 = vld [vmem:[#allocation2 + $0x8] sm:$0xff]
        %v335 = vld [vmem:[#allocation2 + $0x10] sm:$0xff]
        %v336 = vld [vmem:[#allocation2 + $0x18] sm:$0xff]
        %v341 = vcombine.low %v333, %v333
        %v342 = vcombine.low %v334, %v334
        %v343 = vcombine.low %v335, %v335
        %v344 = vcombine.low %v336, %v336
        %345 = vrot.lane.b32.xlu0 %v341, 118
        %v346 = vpop.permute.xlu0 %345
        %347 = vrot.lane.b32.xlu0 %v333, 118
        %v348 = vpop.permute.xlu0 %347
        %349 = vrot.lane.b32.xlu0 %v342, 118
        %v350 = vpop.permute.xlu0 %349
        %351 = vrot.lane.b32.xlu0 %v334, 118
        %v352 = vpop.permute.xlu0 %351
        %353 = vrot.lane.b32.xlu0 %v343, 118
        %v354 = vpop.permute.xlu0 %353
        %355 = vrot.lane.b32.xlu0 %v335, 118
        %v356 = vpop.permute.xlu0 %355
        %357 = vrot.lane.b32.xlu0 %v344, 118
        %v358 = vpop.permute.xlu0 %357
        %359 = vrot.lane.b32.xlu0 %v336, 118
        %v360 = vpop.permute.xlu0 %359
        %vm361 = vcmask 965632
        %v362 = vsel %vm361, %v346, %v348
        %v363 = vsel %vm361, %v348, %v350
        %v364 = vsel %vm361, %v350, %v352
        %v365 = vsel %vm361, %v352, %v354
        %v366 = vsel %vm361, %v354, %v356
        %v367 = vsel %vm361, %v356, %v358
        %v368 = vsel %vm361, %v358, %v360
        %376 = vst [vmem:[#allocation3 + $0x38] sm:$0xf0] %v362
        %377 = vst [vmem:[#allocation3 + $0x40] sm:$0xf0] %v363
        %378 = vst [vmem:[#allocation3 + $0x48] sm:$0xf0] %v364
        %379 = vst [vmem:[#allocation3 + $0x50] sm:$0xf0] %v365
        %380 = vst [vmem:[#allocation3 + $0x58] sm:$0xf0] %v366
        %381 = vst [vmem:[#allocation3 + $0x60] sm:$0xf0] %v367
        %382 = vst [vmem:[#allocation3 + $0x68] sm:$0xf0] %v368
        %v383 = vld [vmem:[#allocation2] sm:$0xff]
        %v384 = vld [vmem:[#allocation2 + $0x8] sm:$0xff]
        %v385 = vld [vmem:[#allocation2 + $0x10] sm:$0xff]
        %v386 = vld [vmem:[#allocation2 + $0x18] sm:$0xff]
        %v391 = vcombine.high %v383, %v383
        %v392 = vcombine.high %v384, %v384
        %v393 = vcombine.high %v385, %v385
        %v394 = vcombine.high %v386, %v386
        %395 = vrot.lane.b32.xlu0 %v383, 117
        %v396 = vpop.permute.xlu0 %395
        %397 = vrot.lane.b32.xlu0 %v391, 117
        %v398 = vpop.permute.xlu0 %397
        %399 = vrot.lane.b32.xlu0 %v384, 117
        %v400 = vpop.permute.xlu0 %399
        %401 = vrot.lane.b32.xlu0 %v392, 117
        %v402 = vpop.permute.xlu0 %401
        %403 = vrot.lane.b32.xlu0 %v385, 117
        %v404 = vpop.permute.xlu0 %403
        %405 = vrot.lane.b32.xlu0 %v393, 117
        %v406 = vpop.permute.xlu0 %405
        %407 = vrot.lane.b32.xlu0 %v386, 117
        %v408 = vpop.permute.xlu0 %407
        %409 = vrot.lane.b32.xlu0 %v394, 117
        %v410 = vpop.permute.xlu0 %409
        %vm411 = vcmask 957440
        %v412 = vsel %vm411, %v396, %v398
        %v413 = vsel %vm411, %v398, %v400
        %v414 = vsel %vm411, %v400, %v402
        %v415 = vsel %vm411, %v402, %v404
        %v416 = vsel %vm411, %v404, %v406
        %v417 = vsel %vm411, %v406, %v408
        %v418 = vsel %vm411, %v408, %v410
        %426 = vst [vmem:[#allocation3 + $0x70] sm:$0xf] %v412
        %427 = vst [vmem:[#allocation3 + $0x78] sm:$0xf] %v413
        %428 = vst [vmem:[#allocation3 + $0x80] sm:$0xf] %v414
        %429 = vst [vmem:[#allocation3 + $0x88] sm:$0xf] %v415
        %430 = vst [vmem:[#allocation3 + $0x90] sm:$0xf] %v416
        %431 = vst [vmem:[#allocation3 + $0x98] sm:$0xf] %v417
        %432 = vst [vmem:[#allocation3 + $0xa0] sm:$0xf] %v418
        %v433 = vld [vmem:[#allocation2] sm:$0xff]
        %v434 = vld [vmem:[#allocation2 + $0x8] sm:$0xff]
        %v435 = vld [vmem:[#allocation2 + $0x10] sm:$0xff]
        %v436 = vld [vmem:[#allocation2 + $0x18] sm:$0xff]
        %v441 = vcombine.low %v433, %v433
        %v442 = vcombine.low %v434, %v434
        %v443 = vcombine.low %v435, %v435
        %v444 = vcombine.low %v436, %v436
        %445 = vrot.lane.b32.xlu0 %v441, 116
        %v446 = vpop.permute.xlu0 %445
        %447 = vrot.lane.b32.xlu0 %v433, 116
        %v448 = vpop.permute.xlu0 %447
        %449 = vrot.lane.b32.xlu0 %v442, 116
        %v450 = vpop.permute.xlu0 %449
        %451 = vrot.lane.b32.xlu0 %v434, 116
        %v452 = vpop.permute.xlu0 %451
        %453 = vrot.lane.b32.xlu0 %v443, 116
        %v454 = vpop.permute.xlu0 %453
        %455 = vrot.lane.b32.xlu0 %v435, 116
        %v456 = vpop.permute.xlu0 %455
        %457 = vrot.lane.b32.xlu0 %v444, 116
        %v458 = vpop.permute.xlu0 %457
        %459 = vrot.lane.b32.xlu0 %v436, 116
        %v460 = vpop.permute.xlu0 %459
        %vm461 = vcmask 949248
        %v462 = vsel %vm461, %v446, %v448
        %v463 = vsel %vm461, %v448, %v450
        %v464 = vsel %vm461, %v450, %v452
        %v465 = vsel %vm461, %v452, %v454
        %v466 = vsel %vm461, %v454, %v456
        %v467 = vsel %vm461, %v456, %v458
        %v468 = vsel %vm461, %v458, %v460
        %476 = vst [vmem:[#allocation3 + $0x70] sm:$0xf0] %v462
        %477 = vst [vmem:[#allocation3 + $0x78] sm:$0xf0] %v463
        %478 = vst [vmem:[#allocation3 + $0x80] sm:$0xf0] %v464
        %479 = vst [vmem:[#allocation3 + $0x88] sm:$0xf0] %v465
        %480 = vst [vmem:[#allocation3 + $0x90] sm:$0xf0] %v466
        %481 = vst [vmem:[#allocation3 + $0x98] sm:$0xf0] %v467
        %482 = vst [vmem:[#allocation3 + $0xa0] sm:$0xf0] %v468
        %v483 = vld [vmem:[#allocation2] sm:$0xff]
        %v484 = vld [vmem:[#allocation2 + $0x8] sm:$0xff]
        %v485 = vld [vmem:[#allocation2 + $0x10] sm:$0xff]
        %v486 = vld [vmem:[#allocation2 + $0x18] sm:$0xff]
        %v491 = vcombine.high %v483, %v483
        %v492 = vcombine.high %v484, %v484
        %v493 = vcombine.high %v485, %v485
        %v494 = vcombine.high %v486, %v486
        %495 = vrot.lane.b32.xlu0 %v483, 108
        %v496 = vpop.permute.xlu0 %495
        %497 = vrot.lane.b32.xlu0 %v491, 108
        %v498 = vpop.permute.xlu0 %497
        %499 = vrot.lane.b32.xlu0 %v484, 108
        %v500 = vpop.permute.xlu0 %499
        %501 = vrot.lane.b32.xlu0 %v492, 108
        %v502 = vpop.permute.xlu0 %501
        %503 = vrot.lane.b32.xlu0 %v485, 108
        %v504 = vpop.permute.xlu0 %503
        %505 = vrot.lane.b32.xlu0 %v493, 108
        %v506 = vpop.permute.xlu0 %505
        %507 = vrot.lane.b32.xlu0 %v486, 108
        %v508 = vpop.permute.xlu0 %507
        %509 = vrot.lane.b32.xlu0 %v494, 108
        %v510 = vpop.permute.xlu0 %509
        %vm511 = vcmask 883712
        %v512 = vsel %vm511, %v496, %v498
        %v513 = vsel %vm511, %v498, %v500
        %v514 = vsel %vm511, %v500, %v502
        %v515 = vsel %vm511, %v502, %v504
        %v516 = vsel %vm511, %v504, %v506
        %v517 = vsel %vm511, %v506, %v508
        %v518 = vsel %vm511, %v508, %v510
        %526 = vst [vmem:[#allocation3 + $0xa8] sm:$0xf] %v512
        %527 = vst [vmem:[#allocation3 + $0xb0] sm:$0xf] %v513
        %528 = vst [vmem:[#allocation3 + $0xb8] sm:$0xf] %v514
        %529 = vst [vmem:[#allocation3 + $0xc0] sm:$0xf] %v515
        %530 = vst [vmem:[#allocation3 + $0xc8] sm:$0xf] %v516
        %531 = vst [vmem:[#allocation3 + $0xd0] sm:$0xf] %v517
        %532 = vst [vmem:[#allocation3 + $0xd8] sm:$0xf] %v518
        %v533 = vld [vmem:[#allocation2] sm:$0xff]
        %v534 = vld [vmem:[#allocation2 + $0x8] sm:$0xff]
        %v535 = vld [vmem:[#allocation2 + $0x10] sm:$0xff]
        %v536 = vld [vmem:[#allocation2 + $0x18] sm:$0xff]
        %v541 = vcombine.low %v533, %v533
        %v542 = vcombine.low %v534, %v534
        %v543 = vcombine.low %v535, %v535
        %v544 = vcombine.low %v536, %v536
        %545 = vrot.lane.b32.xlu0 %v541, 107
        %v546 = vpop.permute.xlu0 %545
        %547 = vrot.lane.b32.xlu0 %v533, 107
        %v548 = vpop.permute.xlu0 %547
        %549 = vrot.lane.b32.xlu0 %v542, 107
        %v550 = vpop.permute.xlu0 %549
        %551 = vrot.lane.b32.xlu0 %v534, 107
        %v552 = vpop.permute.xlu0 %551
        %553 = vrot.lane.b32.xlu0 %v543, 107
        %v554 = vpop.permute.xlu0 %553
        %555 = vrot.lane.b32.xlu0 %v535, 107
        %v556 = vpop.permute.xlu0 %555
        %557 = vrot.lane.b32.xlu0 %v544, 107
        %v558 = vpop.permute.xlu0 %557
        %559 = vrot.lane.b32.xlu0 %v536, 107
        %v560 = vpop.permute.xlu0 %559
        %vm561 = vcmask 875520
        %v562 = vsel %vm561, %v546, %v548
        %v563 = vsel %vm561, %v548, %v550
        %v564 = vsel %vm561, %v550, %v552
        %v565 = vsel %vm561, %v552, %v554
        %v566 = vsel %vm561, %v554, %v556
        %v567 = vsel %vm561, %v556, %v558
        %v568 = vsel %vm561, %v558, %v560
        %576 = vst [vmem:[#allocation3 + $0xa8] sm:$0xf0] %v562
        %577 = vst [vmem:[#allocation3 + $0xb0] sm:$0xf0] %v563
        %578 = vst [vmem:[#allocation3 + $0xb8] sm:$0xf0] %v564
        %579 = vst [vmem:[#allocation3 + $0xc0] sm:$0xf0] %v565
        %580 = vst [vmem:[#allocation3 + $0xc8] sm:$0xf0] %v566
        %581 = vst [vmem:[#allocation3 + $0xd0] sm:$0xf0] %v567
        %582 = vst [vmem:[#allocation3 + $0xd8] sm:$0xf0] %v568
        %v583 = vld [vmem:[#allocation2] sm:$0xff]
        %v584 = vld [vmem:[#allocation2 + $0x8] sm:$0xff]
        %v585 = vld [vmem:[#allocation2 + $0x10] sm:$0xff]
        %v586 = vld [vmem:[#allocation2 + $0x18] sm:$0xff]
        %v591 = vcombine.high %v583, %v583
        %v592 = vcombine.high %v584, %v584
        %v593 = vcombine.high %v585, %v585
        %v594 = vcombine.high %v586, %v586
        %595 = vrot.lane.b32.xlu0 %v583, 106
        %v596 = vpop.permute.xlu0 %595
        %597 = vrot.lane.b32.xlu0 %v591, 106
        %v598 = vpop.permute.xlu0 %597
        %599 = vrot.lane.b32.xlu0 %v584, 106
        %v600 = vpop.permute.xlu0 %599
        %601 = vrot.lane.b32.xlu0 %v592, 106
        %v602 = vpop.permute.xlu0 %601
        %603 = vrot.lane.b32.xlu0 %v585, 106
        %v604 = vpop.permute.xlu0 %603
        %605 = vrot.lane.b32.xlu0 %v593, 106
        %v606 = vpop.permute.xlu0 %605
        %607 = vrot.lane.b32.xlu0 %v586, 106
        %v608 = vpop.permute.xlu0 %607
        %609 = vrot.lane.b32.xlu0 %v594, 106
        %v610 = vpop.permute.xlu0 %609
        %vm611 = vcmask 867328
        %v612 = vsel %vm611, %v596, %v598
        %v613 = vsel %vm611, %v598, %v600
        %v614 = vsel %vm611, %v600, %v602
        %v615 = vsel %vm611, %v602, %v604
        %v616 = vsel %vm611, %v604, %v606
        %v617 = vsel %vm611, %v606, %v608
        %v618 = vsel %vm611, %v608, %v610
        %626 = vst [vmem:[#allocation3 + $0xe0] sm:$0xf] %v612
        %627 = vst [vmem:[#allocation3 + $0xe8] sm:$0xf] %v613
        %628 = vst [vmem:[#allocation3 + $0xf0] sm:$0xf] %v614
        %629 = vst [vmem:[#allocation3 + $0xf8] sm:$0xf] %v615
        %630 = vst [vmem:[#allocation3 + $0x100] sm:$0xf] %v616
        %631 = vst [vmem:[#allocation3 + $0x108] sm:$0xf] %v617
        %632 = vst [vmem:[#allocation3 + $0x110] sm:$0xf] %v618
        %v633 = vld [vmem:[#allocation2] sm:$0xff]
        %v634 = vld [vmem:[#allocation2 + $0x8] sm:$0xff]
        %v635 = vld [vmem:[#allocation2 + $0x10] sm:$0xff]
        %v636 = vld [vmem:[#allocation2 + $0x18] sm:$0xff]
        %v641 = vcombine.low %v633, %v633
        %v642 = vcombine.low %v634, %v634
        %v643 = vcombine.low %v635, %v635
        %v644 = vcombine.low %v636, %v636
        %645 = vrot.lane.b32.xlu0 %v641, 28
        %v646 = vpop.permute.xlu0 %645
        %647 = vrot.lane.b32.xlu0 %v633, 28
        %v648 = vpop.permute.xlu0 %647
        %649 = vrot.lane.b32.xlu0 %v642, 28
        %v650 = vpop.permute.xlu0 %649
        %651 = vrot.lane.b32.xlu0 %v634, 28
        %v652 = vpop.permute.xlu0 %651
        %653 = vrot.lane.b32.xlu0 %v643, 28
        %v654 = vpop.permute.xlu0 %653
        %655 = vrot.lane.b32.xlu0 %v635, 28
        %v656 = vpop.permute.xlu0 %655
        %657 = vrot.lane.b32.xlu0 %v644, 28
        %v658 = vpop.permute.xlu0 %657
        %659 = vrot.lane.b32.xlu0 %v636, 28
        %v660 = vpop.permute.xlu0 %659
        %vm661 = vcmask 228352
        %v662 = vsel %vm661, %v646, %v648
        %v663 = vsel %vm661, %v648, %v650
        %v664 = vsel %vm661, %v650, %v652
        %v665 = vsel %vm661, %v652, %v654
        %v666 = vsel %vm661, %v654, %v656
        %v667 = vsel %vm661, %v656, %v658
        %v668 = vsel %vm661, %v658, %v660
        %676 = vst [vmem:[#allocation3 + $0xe0] sm:$0xf0] %v662
        %677 = vst [vmem:[#allocation3 + $0xe8] sm:$0xf0] %v663
        %678 = vst [vmem:[#allocation3 + $0xf0] sm:$0xf0] %v664
        %679 = vst [vmem:[#allocation3 + $0xf8] sm:$0xf0] %v665
        %680 = vst [vmem:[#allocation3 + $0x100] sm:$0xf0] %v666
        %681 = vst [vmem:[#allocation3 + $0x108] sm:$0xf0] %v667
        %682 = vst [vmem:[#allocation3 + $0x110] sm:$0xf0] %v668
        %v683 = vld [vmem:[#allocation2] sm:$0xff]
        %v684 = vld [vmem:[#allocation2 + $0x8] sm:$0xff]
        %v685 = vld [vmem:[#allocation2 + $0x10] sm:$0xff]
        %v686 = vld [vmem:[#allocation2 + $0x18] sm:$0xff]
        %v691 = vcombine.high %v683, %v683
        %v692 = vcombine.high %v684, %v684
        %v693 = vcombine.high %v685, %v685
        %v694 = vcombine.high %v686, %v686
        %695 = vrot.lane.b32.xlu0 %v683, 27
        %v696 = vpop.permute.xlu0 %695
        %697 = vrot.lane.b32.xlu0 %v691, 27
        %v698 = vpop.permute.xlu0 %697
        %699 = vrot.lane.b32.xlu0 %v684, 27
        %v700 = vpop.permute.xlu0 %699
        %701 = vrot.lane.b32.xlu0 %v692, 27
        %v702 = vpop.permute.xlu0 %701
        %703 = vrot.lane.b32.xlu0 %v685, 27
        %v704 = vpop.permute.xlu0 %703
        %705 = vrot.lane.b32.xlu0 %v693, 27
        %v706 = vpop.permute.xlu0 %705
        %707 = vrot.lane.b32.xlu0 %v686, 27
        %v708 = vpop.permute.xlu0 %707
        %709 = vrot.lane.b32.xlu0 %v694, 27
        %v710 = vpop.permute.xlu0 %709
        %vm711 = vcmask 220160
        %v712 = vsel %vm711, %v696, %v698
        %v713 = vsel %vm711, %v698, %v700
        %v714 = vsel %vm711, %v700, %v702
        %v715 = vsel %vm711, %v702, %v704
        %v716 = vsel %vm711, %v704, %v706
        %v717 = vsel %vm711, %v706, %v708
        %v718 = vsel %vm711, %v708, %v710
        %726 = vst [vmem:[#allocation3 + $0x118] sm:$0xf] %v712
        %727 = vst [vmem:[#allocation3 + $0x120] sm:$0xf] %v713
        %728 = vst [vmem:[#allocation3 + $0x128] sm:$0xf] %v714
        %729 = vst [vmem:[#allocation3 + $0x130] sm:$0xf] %v715
        %730 = vst [vmem:[#allocation3 + $0x138] sm:$0xf] %v716
        %731 = vst [vmem:[#allocation3 + $0x140] sm:$0xf] %v717
        %732 = vst [vmem:[#allocation3 + $0x148] sm:$0xf] %v718
        %v733 = vld [vmem:[#allocation2] sm:$0xff]
        %v734 = vld [vmem:[#allocation2 + $0x8] sm:$0xff]
        %v735 = vld [vmem:[#allocation2 + $0x10] sm:$0xff]
        %v736 = vld [vmem:[#allocation2 + $0x18] sm:$0xff]
        %v741 = vcombine.low %v733, %v733
        %v742 = vcombine.low %v734, %v734
        %v743 = vcombine.low %v735, %v735
        %v744 = vcombine.low %v736, %v736
        %745 = vrot.lane.b32.xlu0 %v741, 26
        %v746 = vpop.permute.xlu0 %745
        %747 = vrot.lane.b32.xlu0 %v733, 26
        %v748 = vpop.permute.xlu0 %747
        %749 = vrot.lane.b32.xlu0 %v742, 26
        %v750 = vpop.permute.xlu0 %749
        %751 = vrot.lane.b32.xlu0 %v734, 26
        %v752 = vpop.permute.xlu0 %751
        %753 = vrot.lane.b32.xlu0 %v743, 26
        %v754 = vpop.permute.xlu0 %753
        %755 = vrot.lane.b32.xlu0 %v735, 26
        %v756 = vpop.permute.xlu0 %755
        %757 = vrot.lane.b32.xlu0 %v744, 26
        %v758 = vpop.permute.xlu0 %757
        %759 = vrot.lane.b32.xlu0 %v736, 26
        %v760 = vpop.permute.xlu0 %759
        %vm761 = vcmask 211968
        %v762 = vsel %vm761, %v746, %v748
        %v763 = vsel %vm761, %v748, %v750
        %v764 = vsel %vm761, %v750, %v752
        %v765 = vsel %vm761, %v752, %v754
        %v766 = vsel %vm761, %v754, %v756
        %v767 = vsel %vm761, %v756, %v758
        %v768 = vsel %vm761, %v758, %v760
        %776 = vst [vmem:[#allocation3 + $0x118] sm:$0xf0] %v762
        %777 = vst [vmem:[#allocation3 + $0x120] sm:$0xf0] %v763
        %778 = vst [vmem:[#allocation3 + $0x128] sm:$0xf0] %v764
        %779 = vst [vmem:[#allocation3 + $0x130] sm:$0xf0] %v765
        %780 = vst [vmem:[#allocation3 + $0x138] sm:$0xf0] %v766
        %781 = vst [vmem:[#allocation3 + $0x140] sm:$0xf0] %v767
        %782 = vst [vmem:[#allocation3 + $0x148] sm:$0xf0] %v768
        %v783 = vld [vmem:[#allocation2] sm:$0xff]
        %v784 = vld [vmem:[#allocation2 + $0x8] sm:$0xff]
        %v785 = vld [vmem:[#allocation2 + $0x10] sm:$0xff]
        %v786 = vld [vmem:[#allocation2 + $0x18] sm:$0xff]
        %v791 = vcombine.high %v783, %v783
        %v792 = vcombine.high %v784, %v784
        %v793 = vcombine.high %v785, %v785
        %v794 = vcombine.high %v786, %v786
        %795 = vrot.lane.b32.xlu0 %v783, 18
        %v796 = vpop.permute.xlu0 %795
        %797 = vrot.lane.b32.xlu0 %v791, 18
        %v798 = vpop.permute.xlu0 %797
        %799 = vrot.lane.b32.xlu0 %v784, 18
        %v800 = vpop.permute.xlu0 %799
        %801 = vrot.lane.b32.xlu0 %v792, 18
        %v802 = vpop.permute.xlu0 %801
        %803 = vrot.lane.b32.xlu0 %v785, 18
        %v804 = vpop.permute.xlu0 %803
        %805 = vrot.lane.b32.xlu0 %v793, 18
        %v806 = vpop.permute.xlu0 %805
        %807 = vrot.lane.b32.xlu0 %v786, 18
        %v808 = vpop.permute.xlu0 %807
        %809 = vrot.lane.b32.xlu0 %v794, 18
        %v810 = vpop.permute.xlu0 %809
        %vm811 = vcmask 146432
        %v812 = vsel %vm811, %v796, %v798
        %v813 = vsel %vm811, %v798, %v800
        %v814 = vsel %vm811, %v800, %v802
        %v815 = vsel %vm811, %v802, %v804
        %v816 = vsel %vm811, %v804, %v806
        %v817 = vsel %vm811, %v806, %v808
        %v818 = vsel %vm811, %v808, %v810
        %826 = vst [vmem:[#allocation3 + $0x150] sm:$0xf] %v812
        %827 = vst [vmem:[#allocation3 + $0x158] sm:$0xf] %v813
        %828 = vst [vmem:[#allocation3 + $0x160] sm:$0xf] %v814
        %829 = vst [vmem:[#allocation3 + $0x168] sm:$0xf] %v815
        %830 = vst [vmem:[#allocation3 + $0x170] sm:$0xf] %v816
        %831 = vst [vmem:[#allocation3 + $0x178] sm:$0xf] %v817
        %832 = vst [vmem:[#allocation3 + $0x180] sm:$0xf] %v818
        %v833 = vld [vmem:[#allocation2] sm:$0xff]
        %v834 = vld [vmem:[#allocation2 + $0x8] sm:$0xff]
        %v835 = vld [vmem:[#allocation2 + $0x10] sm:$0xff]
        %v836 = vld [vmem:[#allocation2 + $0x18] sm:$0xff]
        %v841 = vcombine.low %v833, %v833
        %v842 = vcombine.low %v834, %v834
        %v843 = vcombine.low %v835, %v835
        %v844 = vcombine.low %v836, %v836
        %845 = vrot.lane.b32.xlu0 %v841, 17
        %v846 = vpop.permute.xlu0 %845
        %847 = vrot.lane.b32.xlu0 %v833, 17
        %v848 = vpop.permute.xlu0 %847
        %849 = vrot.lane.b32.xlu0 %v842, 17
        %v850 = vpop.permute.xlu0 %849
        %851 = vrot.lane.b32.xlu0 %v834, 17
        %v852 = vpop.permute.xlu0 %851
        %853 = vrot.lane.b32.xlu0 %v843, 17
        %v854 = vpop.permute.xlu0 %853
        %855 = vrot.lane.b32.xlu0 %v835, 17
        %v856 = vpop.permute.xlu0 %855
        %857 = vrot.lane.b32.xlu0 %v844, 17
        %v858 = vpop.permute.xlu0 %857
        %859 = vrot.lane.b32.xlu0 %v836, 17
        %v860 = vpop.permute.xlu0 %859
        %vm861 = vcmask 138240
        %v862 = vsel %vm861, %v846, %v848
        %v863 = vsel %vm861, %v848, %v850
        %v864 = vsel %vm861, %v850, %v852
        %v865 = vsel %vm861, %v852, %v854
        %v866 = vsel %vm861, %v854, %v856
        %v867 = vsel %vm861, %v856, %v858
        %v868 = vsel %vm861, %v858, %v860
        %876 = vst [vmem:[#allocation3 + $0x150] sm:$0xf0] %v862
        %877 = vst [vmem:[#allocation3 + $0x158] sm:$0xf0] %v863
        %878 = vst [vmem:[#allocation3 + $0x160] sm:$0xf0] %v864
        %879 = vst [vmem:[#allocation3 + $0x168] sm:$0xf0] %v865
        %880 = vst [vmem:[#allocation3 + $0x170] sm:$0xf0] %v866
        %881 = vst [vmem:[#allocation3 + $0x178] sm:$0xf0] %v867
        %882 = vst [vmem:[#allocation3 + $0x180] sm:$0xf0] %v868
        %v883 = vld [vmem:[#allocation2] sm:$0xff]
        %v884 = vld [vmem:[#allocation2 + $0x8] sm:$0xff]
        %v885 = vld [vmem:[#allocation2 + $0x10] sm:$0xff]
        %v886 = vld [vmem:[#allocation2 + $0x18] sm:$0xff]
        %v891 = vcombine.high %v883, %v883
        %v892 = vcombine.high %v884, %v884
        %v893 = vcombine.high %v885, %v885
        %v894 = vcombine.high %v886, %v886
        %895 = vrot.lane.b32.xlu0 %v883, 16
        %v896 = vpop.permute.xlu0 %895
        %897 = vrot.lane.b32.xlu0 %v891, 16
        %v898 = vpop.permute.xlu0 %897
        %899 = vrot.lane.b32.xlu0 %v884, 16
        %v900 = vpop.permute.xlu0 %899
        %901 = vrot.lane.b32.xlu0 %v892, 16
        %v902 = vpop.permute.xlu0 %901
        %903 = vrot.lane.b32.xlu0 %v885, 16
        %v904 = vpop.permute.xlu0 %903
        %905 = vrot.lane.b32.xlu0 %v893, 16
        %v906 = vpop.permute.xlu0 %905
        %907 = vrot.lane.b32.xlu0 %v886, 16
        %v908 = vpop.permute.xlu0 %907
        %909 = vrot.lane.b32.xlu0 %v894, 16
        %v910 = vpop.permute.xlu0 %909
        %vm911 = vcmask 130048
        %v912 = vsel %vm911, %v896, %v898
        %v913 = vsel %vm911, %v898, %v900
        %v914 = vsel %vm911, %v900, %v902
        %v915 = vsel %vm911, %v902, %v904
        %v916 = vsel %vm911, %v904, %v906
        %v917 = vsel %vm911, %v906, %v908
        %v918 = vsel %vm911, %v908, %v910
        %926 = vst [vmem:[#allocation3 + $0x188] sm:$0xf] %v912
        %927 = vst [vmem:[#allocation3 + $0x190] sm:$0xf] %v913
        %928 = vst [vmem:[#allocation3 + $0x198] sm:$0xf] %v914
        %929 = vst [vmem:[#allocation3 + $0x1a0] sm:$0xf] %v915
        %930 = vst [vmem:[#allocation3 + $0x1a8] sm:$0xf] %v916
        %931 = vst [vmem:[#allocation3 + $0x1b0] sm:$0xf] %v917
        %932 = vst [vmem:[#allocation3 + $0x1b8] sm:$0xf] %v918
        %v933 = vld [vmem:[#allocation2] sm:$0xff]
        %v934 = vld [vmem:[#allocation2 + $0x8] sm:$0xff]
        %v935 = vld [vmem:[#allocation2 + $0x10] sm:$0xff]
        %v936 = vld [vmem:[#allocation2 + $0x18] sm:$0xff]
        %v941 = vcombine.low %v933, %v933
        %v942 = vcombine.low %v934, %v934
        %v943 = vcombine.low %v935, %v935
        %v944 = vcombine.low %v936, %v936
        %945 = vrot.lane.b32.xlu0 %v941, 8
        %v946 = vpop.permute.xlu0 %945
        %947 = vrot.lane.b32.xlu0 %v933, 8
        %v948 = vpop.permute.xlu0 %947
        %949 = vrot.lane.b32.xlu0 %v942, 8
        %v950 = vpop.permute.xlu0 %949
        %951 = vrot.lane.b32.xlu0 %v934, 8
        %v952 = vpop.permute.xlu0 %951
        %953 = vrot.lane.b32.xlu0 %v943, 8
        %v954 = vpop.permute.xlu0 %953
        %955 = vrot.lane.b32.xlu0 %v935, 8
        %v956 = vpop.permute.xlu0 %955
        %957 = vrot.lane.b32.xlu0 %v944, 8
        %v958 = vpop.permute.xlu0 %957
        %959 = vrot.lane.b32.xlu0 %v936, 8
        %v960 = vpop.permute.xlu0 %959
        %vm961 = vcmask 64512
        %v962 = vsel %vm961, %v946, %v948
        %v963 = vsel %vm961, %v948, %v950
        %v964 = vsel %vm961, %v950, %v952
        %v965 = vsel %vm961, %v952, %v954
        %v966 = vsel %vm961, %v954, %v956
        %v967 = vsel %vm961, %v956, %v958
        %v968 = vsel %vm961, %v958, %v960
        %976 = vst [vmem:[#allocation3 + $0x188] sm:$0xf0] %v962
        %977 = vst [vmem:[#allocation3 + $0x190] sm:$0xf0] %v963
        %978 = vst [vmem:[#allocation3 + $0x198] sm:$0xf0] %v964
        %979 = vst [vmem:[#allocation3 + $0x1a0] sm:$0xf0] %v965
        %980 = vst [vmem:[#allocation3 + $0x1a8] sm:$0xf0] %v966
        %981 = vst [vmem:[#allocation3 + $0x1b0] sm:$0xf0] %v967
        %982 = vst [vmem:[#allocation3 + $0x1b8] sm:$0xf0] %v968
        %v983 = vld [vmem:[#allocation2] sm:$0xff]
        %v984 = vld [vmem:[#allocation2 + $0x8] sm:$0xff]
        %v985 = vld [vmem:[#allocation2 + $0x10] sm:$0xff]
        %v986 = vld [vmem:[#allocation2 + $0x18] sm:$0xff]
        %v991 = vcombine.high %v983, %v983
        %v992 = vcombine.high %v984, %v984
        %v993 = vcombine.high %v985, %v985
        %v994 = vcombine.high %v986, %v986
        %995 = vrot.lane.b32.xlu0 %v983, 7
        %v996 = vpop.permute.xlu0 %995
        %997 = vrot.lane.b32.xlu0 %v991, 7
        %v998 = vpop.permute.xlu0 %997
        %999 = vrot.lane.b32.xlu0 %v984, 7
        %v1000 = vpop.permute.xlu0 %999
        %1001 = vrot.lane.b32.xlu0 %v992, 7
        %v1002 = vpop.permute.xlu0 %1001
        %1003 = vrot.lane.b32.xlu0 %v985, 7
        %v1004 = vpop.permute.xlu0 %1003
        %1005 = vrot.lane.b32.xlu0 %v993, 7
        %v1006 = vpop.permute.xlu0 %1005
        %1007 = vrot.lane.b32.xlu0 %v986, 7
        %v1008 = vpop.permute.xlu0 %1007
        %1009 = vrot.lane.b32.xlu0 %v994, 7
        %v1010 = vpop.permute.xlu0 %1009
        %vm1011 = vcmask 56320
        %v1012 = vsel %vm1011, %v996, %v998
        %v1013 = vsel %vm1011, %v998, %v1000
        %v1014 = vsel %vm1011, %v1000, %v1002
        %v1015 = vsel %vm1011, %v1002, %v1004
        %v1016 = vsel %vm1011, %v1004, %v1006
        %v1017 = vsel %vm1011, %v1006, %v1008
        %v1018 = vsel %vm1011, %v1008, %v1010
        %1026 = vst [vmem:[#allocation3 + $0x1c0] sm:$0xf] %v1012
        %1027 = vst [vmem:[#allocation3 + $0x1c8] sm:$0xf] %v1013
        %1028 = vst [vmem:[#allocation3 + $0x1d0] sm:$0xf] %v1014
        %1029 = vst [vmem:[#allocation3 + $0x1d8] sm:$0xf] %v1015
        %1030 = vst [vmem:[#allocation3 + $0x1e0] sm:$0xf] %v1016
        %1031 = vst [vmem:[#allocation3 + $0x1e8] sm:$0xf] %v1017
        %1032 = vst [vmem:[#allocation3 + $0x1f0] sm:$0xf] %v1018
        %v1033 = vld [vmem:[#allocation2] sm:$0xff]
        %v1034 = vld [vmem:[#allocation2 + $0x8] sm:$0xff]
        %v1035 = vld [vmem:[#allocation2 + $0x10] sm:$0xff]
        %v1036 = vld [vmem:[#allocation2 + $0x18] sm:$0xff]
        %v1041 = vcombine.low %v1033, %v1033
        %v1042 = vcombine.low %v1034, %v1034
        %v1043 = vcombine.low %v1035, %v1035
        %v1044 = vcombine.low %v1036, %v1036
        %1045 = vrot.lane.b32.xlu0 %v1041, 6
        %v1046 = vpop.permute.xlu0 %1045
        %1047 = vrot.lane.b32.xlu0 %v1033, 6
        %v1048 = vpop.permute.xlu0 %1047
        %1049 = vrot.lane.b32.xlu0 %v1042, 6
        %v1050 = vpop.permute.xlu0 %1049
        %1051 = vrot.lane.b32.xlu0 %v1034, 6
        %v1052 = vpop.permute.xlu0 %1051
        %1053 = vrot.lane.b32.xlu0 %v1043, 6
        %v1054 = vpop.permute.xlu0 %1053
        %1055 = vrot.lane.b32.xlu0 %v1035, 6
        %v1056 = vpop.permute.xlu0 %1055
        %1057 = vrot.lane.b32.xlu0 %v1044, 6
        %v1058 = vpop.permute.xlu0 %1057
        %1059 = vrot.lane.b32.xlu0 %v1036, 6
        %v1060 = vpop.permute.xlu0 %1059
        %vm1061 = vcmask 48128
        %v1062 = vsel %vm1061, %v1046, %v1048
        %v1063 = vsel %vm1061, %v1048, %v1050
        %v1064 = vsel %vm1061, %v1050, %v1052
        %v1065 = vsel %vm1061, %v1052, %v1054
        %v1066 = vsel %vm1061, %v1054, %v1056
        %v1067 = vsel %vm1061, %v1056, %v1058
        %v1068 = vsel %vm1061, %v1058, %v1060
        %1076 = vst [vmem:[#allocation3 + $0x1c0] sm:$0xf0] %v1062
        %1077 = vst [vmem:[#allocation3 + $0x1c8] sm:$0xf0] %v1063
        %1078 = vst [vmem:[#allocation3 + $0x1d0] sm:$0xf0] %v1064
        %1079 = vst [vmem:[#allocation3 + $0x1d8] sm:$0xf0] %v1065
        %1080 = vst [vmem:[#allocation3 + $0x1e0] sm:$0xf0] %v1066
        %1081 = vst [vmem:[#allocation3 + $0x1e8] sm:$0xf0] %v1067
        %1082 = vst [vmem:[#allocation3 + $0x1f0] sm:$0xf0] %v1068
        %v1083 = vld [vmem:[#allocation2 + $0x4] sm:$0xff]
        %v1084 = vld [vmem:[#allocation2 + $0xc] sm:$0xff]
        %v1085 = vld [vmem:[#allocation2 + $0x14] sm:$0xff]
        %v1086 = vld [vmem:[#allocation2 + $0x1c] sm:$0xff]
        %v1091 = vcombine.high %v1083, %v1083
        %v1092 = vcombine.high %v1084, %v1084
        %v1093 = vcombine.high %v1085, %v1085
        %v1094 = vcombine.high %v1086, %v1086
        %1095 = vrot.lane.b32.xlu0 %v1083, 56
        %v1096 = vpop.permute.xlu0 %1095
        %1097 = vrot.lane.b32.xlu0 %v1091, 56
        %v1098 = vpop.permute.xlu0 %1097
        %1099 = vrot.lane.b32.xlu0 %v1084, 56
        %v1100 = vpop.permute.xlu0 %1099
        %1101 = vrot.lane.b32.xlu0 %v1092, 56
        %v1102 = vpop.permute.xlu0 %1101
        %1103 = vrot.lane.b32.xlu0 %v1085, 56
        %v1104 = vpop.permute.xlu0 %1103
        %1105 = vrot.lane.b32.xlu0 %v1093, 56
        %v1106 = vpop.permute.xlu0 %1105
        %1107 = vrot.lane.b32.xlu0 %v1086, 56
        %v1108 = vpop.permute.xlu0 %1107
        %1109 = vrot.lane.b32.xlu0 %v1094, 56
        %v1110 = vpop.permute.xlu0 %1109
        %vm1111 = vcmask 457728
        %v1112 = vsel %vm1111, %v1096, %v1098
        %v1113 = vsel %vm1111, %v1098, %v1100
        %v1114 = vsel %vm1111, %v1100, %v1102
        %v1115 = vsel %vm1111, %v1102, %v1104
        %v1116 = vsel %vm1111, %v1104, %v1106
        %v1117 = vsel %vm1111, %v1106, %v1108
        %v1118 = vsel %vm1111, %v1108, %v1110
        %1126 = vst [vmem:[#allocation3 + $0x1f8] sm:$0xf] %v1112
        %1127 = vst [vmem:[#allocation3 + $0x200] sm:$0xf] %v1113
        %1128 = vst [vmem:[#allocation3 + $0x208] sm:$0xf] %v1114
        %1129 = vst [vmem:[#allocation3 + $0x210] sm:$0xf] %v1115
        %1130 = vst [vmem:[#allocation3 + $0x218] sm:$0xf] %v1116
        %1131 = vst [vmem:[#allocation3 + $0x220] sm:$0xf] %v1117
        %1132 = vst [vmem:[#allocation3 + $0x228] sm:$0xf] %v1118
        %v1133 = vld [vmem:[#allocation2 + $0x4] sm:$0xff]
        %v1134 = vld [vmem:[#allocation2 + $0xc] sm:$0xff]
        %v1135 = vld [vmem:[#allocation2 + $0x14] sm:$0xff]
        %v1136 = vld [vmem:[#allocation2 + $0x1c] sm:$0xff]
        %v1141 = vcombine.low %v1133, %v1133
        %v1142 = vcombine.low %v1134, %v1134
        %v1143 = vcombine.low %v1135, %v1135
        %v1144 = vcombine.low %v1136, %v1136
        %1145 = vrot.lane.b32.xlu0 %v1141, 55
        %v1146 = vpop.permute.xlu0 %1145
        %1147 = vrot.lane.b32.xlu0 %v1133, 55
        %v1148 = vpop.permute.xlu0 %1147
        %1149 = vrot.lane.b32.xlu0 %v1142, 55
        %v1150 = vpop.permute.xlu0 %1149
        %1151 = vrot.lane.b32.xlu0 %v1134, 55
        %v1152 = vpop.permute.xlu0 %1151
        %1153 = vrot.lane.b32.xlu0 %v1143, 55
        %v1154 = vpop.permute.xlu0 %1153
        %1155 = vrot.lane.b32.xlu0 %v1135, 55
        %v1156 = vpop.permute.xlu0 %1155
        %1157 = vrot.lane.b32.xlu0 %v1144, 55
        %v1158 = vpop.permute.xlu0 %1157
        %1159 = vrot.lane.b32.xlu0 %v1136, 55
        %v1160 = vpop.permute.xlu0 %1159
        %vm1161 = vcmask 449536
        %v1162 = vsel %vm1161, %v1146, %v1148
        %v1163 = vsel %vm1161, %v1148, %v1150
        %v1164 = vsel %vm1161, %v1150, %v1152
        %v1165 = vsel %vm1161, %v1152, %v1154
        %v1166 = vsel %vm1161, %v1154, %v1156
        %v1167 = vsel %vm1161, %v1156, %v1158
        %v1168 = vsel %vm1161, %v1158, %v1160
        %1176 = vst [vmem:[#allocation3 + $0x1f8] sm:$0xf0] %v1162
        %1177 = vst [vmem:[#allocation3 + $0x200] sm:$0xf0] %v1163
        %1178 = vst [vmem:[#allocation3 + $0x208] sm:$0xf0] %v1164
        %1179 = vst [vmem:[#allocation3 + $0x210] sm:$0xf0] %v1165
        %1180 = vst [vmem:[#allocation3 + $0x218] sm:$0xf0] %v1166
        %1181 = vst [vmem:[#allocation3 + $0x220] sm:$0xf0] %v1167
        %1182 = vst [vmem:[#allocation3 + $0x228] sm:$0xf0] %v1168
        %v1183 = vld [vmem:[#allocation2 + $0x4] sm:$0xff]
        %v1184 = vld [vmem:[#allocation2 + $0xc] sm:$0xff]
        %v1185 = vld [vmem:[#allocation2 + $0x14] sm:$0xff]
        %v1186 = vld [vmem:[#allocation2 + $0x1c] sm:$0xff]
        %v1191 = vcombine.high %v1183, %v1183
        %v1192 = vcombine.high %v1184, %v1184
        %v1193 = vcombine.high %v1185, %v1185
        %v1194 = vcombine.high %v1186, %v1186
        %1195 = vrot.lane.b32.xlu0 %v1183, 54
        %v1196 = vpop.permute.xlu0 %1195
        %1197 = vrot.lane.b32.xlu0 %v1191, 54
        %v1198 = vpop.permute.xlu0 %1197
        %1199 = vrot.lane.b32.xlu0 %v1184, 54
        %v1200 = vpop.permute.xlu0 %1199
        %1201 = vrot.lane.b32.xlu0 %v1192, 54
        %v1202 = vpop.permute.xlu0 %1201
        %1203 = vrot.lane.b32.xlu0 %v1185, 54
        %v1204 = vpop.permute.xlu0 %1203
        %1205 = vrot.lane.b32.xlu0 %v1193, 54
        %v1206 = vpop.permute.xlu0 %1205
        %1207 = vrot.lane.b32.xlu0 %v1186, 54
        %v1208 = vpop.permute.xlu0 %1207
        %1209 = vrot.lane.b32.xlu0 %v1194, 54
        %v1210 = vpop.permute.xlu0 %1209
        %vm1211 = vcmask 441344
        %v1212 = vsel %vm1211, %v1196, %v1198
        %v1213 = vsel %vm1211, %v1198, %v1200
        %v1214 = vsel %vm1211, %v1200, %v1202
        %v1215 = vsel %vm1211, %v1202, %v1204
        %v1216 = vsel %vm1211, %v1204, %v1206
        %v1217 = vsel %vm1211, %v1206, %v1208
        %v1218 = vsel %vm1211, %v1208, %v1210
        %1226 = vst [vmem:[#allocation3 + $0x230] sm:$0xf] %v1212
        %1227 = vst [vmem:[#allocation3 + $0x238] sm:$0xf] %v1213
        %1228 = vst [vmem:[#allocation3 + $0x240] sm:$0xf] %v1214
        %1229 = vst [vmem:[#allocation3 + $0x248] sm:$0xf] %v1215
        %1230 = vst [vmem:[#allocation3 + $0x250] sm:$0xf] %v1216
        %1231 = vst [vmem:[#allocation3 + $0x258] sm:$0xf] %v1217
        %1232 = vst [vmem:[#allocation3 + $0x260] sm:$0xf] %v1218
        %v1233 = vld [vmem:[#allocation2 + $0x4] sm:$0xff]
        %v1234 = vld [vmem:[#allocation2 + $0xc] sm:$0xff]
        %v1235 = vld [vmem:[#allocation2 + $0x14] sm:$0xff]
        %v1236 = vld [vmem:[#allocation2 + $0x1c] sm:$0xff]
        %v1241 = vcombine.low %v1233, %v1233
        %v1242 = vcombine.low %v1234, %v1234
        %v1243 = vcombine.low %v1235, %v1235
        %v1244 = vcombine.low %v1236, %v1236
        %1245 = vrot.lane.b32.xlu0 %v1241, 46
        %v1246 = vpop.permute.xlu0 %1245
        %1247 = vrot.lane.b32.xlu0 %v1233, 46
        %v1248 = vpop.permute.xlu0 %1247
        %1249 = vrot.lane.b32.xlu0 %v1242, 46
        %v1250 = vpop.permute.xlu0 %1249
        %1251 = vrot.lane.b32.xlu0 %v1234, 46
        %v1252 = vpop.permute.xlu0 %1251
        %1253 = vrot.lane.b32.xlu0 %v1243, 46
        %v1254 = vpop.permute.xlu0 %1253
        %1255 = vrot.lane.b32.xlu0 %v1235, 46
        %v1256 = vpop.permute.xlu0 %1255
        %1257 = vrot.lane.b32.xlu0 %v1244, 46
        %v1258 = vpop.permute.xlu0 %1257
        %1259 = vrot.lane.b32.xlu0 %v1236, 46
        %v1260 = vpop.permute.xlu0 %1259
        %vm1261 = vcmask 375808
        %v1262 = vsel %vm1261, %v1246, %v1248
        %v1263 = vsel %vm1261, %v1248, %v1250
        %v1264 = vsel %vm1261, %v1250, %v1252
        %v1265 = vsel %vm1261, %v1252, %v1254
        %v1266 = vsel %vm1261, %v1254, %v1256
        %v1267 = vsel %vm1261, %v1256, %v1258
        %v1268 = vsel %vm1261, %v1258, %v1260
        %1276 = vst [vmem:[#allocation3 + $0x230] sm:$0xf0] %v1262
        %1277 = vst [vmem:[#allocation3 + $0x238] sm:$0xf0] %v1263
        %1278 = vst [vmem:[#allocation3 + $0x240] sm:$0xf0] %v1264
        %1279 = vst [vmem:[#allocation3 + $0x248] sm:$0xf0] %v1265
        %1280 = vst [vmem:[#allocation3 + $0x250] sm:$0xf0] %v1266
        %1281 = vst [vmem:[#allocation3 + $0x258] sm:$0xf0] %v1267
        %1282 = vst [vmem:[#allocation3 + $0x260] sm:$0xf0] %v1268
        %v1283 = vld [vmem:[#allocation2 + $0x4] sm:$0xff]
        %v1284 = vld [vmem:[#allocation2 + $0xc] sm:$0xff]
        %v1285 = vld [vmem:[#allocation2 + $0x14] sm:$0xff]
        %v1286 = vld [vmem:[#allocation2 + $0x1c] sm:$0xff]
        %v1291 = vcombine.high %v1283, %v1283
        %v1292 = vcombine.high %v1284, %v1284
        %v1293 = vcombine.high %v1285, %v1285
        %v1294 = vcombine.high %v1286, %v1286
        %1295 = vrot.lane.b32.xlu0 %v1283, 45
        %v1296 = vpop.permute.xlu0 %1295
        %1297 = vrot.lane.b32.xlu0 %v1291, 45
        %v1298 = vpop.permute.xlu0 %1297
        %1299 = vrot.lane.b32.xlu0 %v1284, 45
        %v1300 = vpop.permute.xlu0 %1299
        %1301 = vrot.lane.b32.xlu0 %v1292, 45
        %v1302 = vpop.permute.xlu0 %1301
        %1303 = vrot.lane.b32.xlu0 %v1285, 45
        %v1304 = vpop.permute.xlu0 %1303
        %1305 = vrot.lane.b32.xlu0 %v1293, 45
        %v1306 = vpop.permute.xlu0 %1305
        %1307 = vrot.lane.b32.xlu0 %v1286, 45
        %v1308 = vpop.permute.xlu0 %1307
        %1309 = vrot.lane.b32.xlu0 %v1294, 45
        %v1310 = vpop.permute.xlu0 %1309
        %vm1311 = vcmask 367616
        %v1312 = vsel %vm1311, %v1296, %v1298
        %v1313 = vsel %vm1311, %v1298, %v1300
        %v1314 = vsel %vm1311, %v1300, %v1302
        %v1315 = vsel %vm1311, %v1302, %v1304
        %v1316 = vsel %vm1311, %v1304, %v1306
        %v1317 = vsel %vm1311, %v1306, %v1308
        %v1318 = vsel %vm1311, %v1308, %v1310
        %1326 = vst [vmem:[#allocation3 + $0x268] sm:$0xf] %v1312
        %1327 = vst [vmem:[#allocation3 + $0x270] sm:$0xf] %v1313
        %1328 = vst [vmem:[#allocation3 + $0x278] sm:$0xf] %v1314
        %1329 = vst [vmem:[#allocation3 + $0x280] sm:$0xf] %v1315
        %1330 = vst [vmem:[#allocation3 + $0x288] sm:$0xf] %v1316
        %1331 = vst [vmem:[#allocation3 + $0x290] sm:$0xf] %v1317
        %1332 = vst [vmem:[#allocation3 + $0x298] sm:$0xf] %v1318
        %v1333 = vld [vmem:[#allocation2 + $0x4] sm:$0xff]
        %v1334 = vld [vmem:[#allocation2 + $0xc] sm:$0xff]
        %v1335 = vld [vmem:[#allocation2 + $0x14] sm:$0xff]
        %v1336 = vld [vmem:[#allocation2 + $0x1c] sm:$0xff]
        %v1341 = vcombine.low %v1333, %v1333
        %v1342 = vcombine.low %v1334, %v1334
        %v1343 = vcombine.low %v1335, %v1335
        %v1344 = vcombine.low %v1336, %v1336
        %1345 = vrot.lane.b32.xlu0 %v1341, 44
        %v1346 = vpop.permute.xlu0 %1345
        %1347 = vrot.lane.b32.xlu0 %v1333, 44
        %v1348 = vpop.permute.xlu0 %1347
        %1349 = vrot.lane.b32.xlu0 %v1342, 44
        %v1350 = vpop.permute.xlu0 %1349
        %1351 = vrot.lane.b32.xlu0 %v1334, 44
        %v1352 = vpop.permute.xlu0 %1351
        %1353 = vrot.lane.b32.xlu0 %v1343, 44
        %v1354 = vpop.permute.xlu0 %1353
        %1355 = vrot.lane.b32.xlu0 %v1335, 44
        %v1356 = vpop.permute.xlu0 %1355
        %1357 = vrot.lane.b32.xlu0 %v1344, 44
        %v1358 = vpop.permute.xlu0 %1357
        %1359 = vrot.lane.b32.xlu0 %v1336, 44
        %v1360 = vpop.permute.xlu0 %1359
        %vm1361 = vcmask 359424
        %v1362 = vsel %vm1361, %v1346, %v1348
        %v1363 = vsel %vm1361, %v1348, %v1350
        %v1364 = vsel %vm1361, %v1350, %v1352
        %v1365 = vsel %vm1361, %v1352, %v1354
        %v1366 = vsel %vm1361, %v1354, %v1356
        %v1367 = vsel %vm1361, %v1356, %v1358
        %v1368 = vsel %vm1361, %v1358, %v1360
        %1376 = vst [vmem:[#allocation3 + $0x268] sm:$0xf0] %v1362
        %1377 = vst [vmem:[#allocation3 + $0x270] sm:$0xf0] %v1363
        %1378 = vst [vmem:[#allocation3 + $0x278] sm:$0xf0] %v1364
        %1379 = vst [vmem:[#allocation3 + $0x280] sm:$0xf0] %v1365
        %1380 = vst [vmem:[#allocation3 + $0x288] sm:$0xf0] %v1366
        %1381 = vst [vmem:[#allocation3 + $0x290] sm:$0xf0] %v1367
        %1382 = vst [vmem:[#allocation3 + $0x298] sm:$0xf0] %v1368
        %v1383 = vld [vmem:[#allocation2 + $0x4] sm:$0xff]
        %v1384 = vld [vmem:[#allocation2 + $0xc] sm:$0xff]
        %v1385 = vld [vmem:[#allocation2 + $0x14] sm:$0xff]
        %v1386 = vld [vmem:[#allocation2 + $0x1c] sm:$0xff]
        %v1391 = vcombine.high %v1383, %v1383
        %v1392 = vcombine.high %v1384, %v1384
        %v1393 = vcombine.high %v1385, %v1385
        %v1394 = vcombine.high %v1386, %v1386
        %1395 = vrot.lane.b32.xlu0 %v1383, 36
        %v1396 = vpop.permute.xlu0 %1395
        %1397 = vrot.lane.b32.xlu0 %v1391, 36
        %v1398 = vpop.permute.xlu0 %1397
        %1399 = vrot.lane.b32.xlu0 %v1384, 36
        %v1400 = vpop.permute.xlu0 %1399
        %1401 = vrot.lane.b32.xlu0 %v1392, 36
        %v1402 = vpop.permute.xlu0 %1401
        %1403 = vrot.lane.b32.xlu0 %v1385, 36
        %v1404 = vpop.permute.xlu0 %1403
        %1405 = vrot.lane.b32.xlu0 %v1393, 36
        %v1406 = vpop.permute.xlu0 %1405
        %1407 = vrot.lane.b32.xlu0 %v1386, 36
        %v1408 = vpop.permute.xlu0 %1407
        %1409 = vrot.lane.b32.xlu0 %v1394, 36
        %v1410 = vpop.permute.xlu0 %1409
        %vm1411 = vcmask 293888
        %v1412 = vsel %vm1411, %v1396, %v1398
        %v1413 = vsel %vm1411, %v1398, %v1400
        %v1414 = vsel %vm1411, %v1400, %v1402
        %v1415 = vsel %vm1411, %v1402, %v1404
        %v1416 = vsel %vm1411, %v1404, %v1406
        %v1417 = vsel %vm1411, %v1406, %v1408
        %v1418 = vsel %vm1411, %v1408, %v1410
        %1426 = vst [vmem:[#allocation3 + $0x2a0] sm:$0xf] %v1412
        %1427 = vst [vmem:[#allocation3 + $0x2a8] sm:$0xf] %v1413
        %1428 = vst [vmem:[#allocation3 + $0x2b0] sm:$0xf] %v1414
        %1429 = vst [vmem:[#allocation3 + $0x2b8] sm:$0xf] %v1415
        %1430 = vst [vmem:[#allocation3 + $0x2c0] sm:$0xf] %v1416
        %1431 = vst [vmem:[#allocation3 + $0x2c8] sm:$0xf] %v1417
        %1432 = vst [vmem:[#allocation3 + $0x2d0] sm:$0xf] %v1418
        %v1433 = vld [vmem:[#allocation2 + $0x4] sm:$0xff]
        %v1434 = vld [vmem:[#allocation2 + $0xc] sm:$0xff]
        %v1435 = vld [vmem:[#allocation2 + $0x14] sm:$0xff]
        %v1436 = vld [vmem:[#allocation2 + $0x1c] sm:$0xff]
        %v1441 = vcombine.low %v1433, %v1433
        %v1442 = vcombine.low %v1434, %v1434
        %v1443 = vcombine.low %v1435, %v1435
        %v1444 = vcombine.low %v1436, %v1436
        %1445 = vrot.lane.b32.xlu0 %v1441, 35
        %v1446 = vpop.permute.xlu0 %1445
        %1447 = vrot.lane.b32.xlu0 %v1433, 35
        %v1448 = vpop.permute.xlu0 %1447
        %1449 = vrot.lane.b32.xlu0 %v1442, 35
        %v1450 = vpop.permute.xlu0 %1449
        %1451 = vrot.lane.b32.xlu0 %v1434, 35
        %v1452 = vpop.permute.xlu0 %1451
        %1453 = vrot.lane.b32.xlu0 %v1443, 35
        %v1454 = vpop.permute.xlu0 %1453
        %1455 = vrot.lane.b32.xlu0 %v1435, 35
        %v1456 = vpop.permute.xlu0 %1455
        %1457 = vrot.lane.b32.xlu0 %v1444, 35
        %v1458 = vpop.permute.xlu0 %1457
        %1459 = vrot.lane.b32.xlu0 %v1436, 35
        %v1460 = vpop.permute.xlu0 %1459
        %vm1461 = vcmask 285696
        %v1462 = vsel %vm1461, %v1446, %v1448
        %v1463 = vsel %vm1461, %v1448, %v1450
        %v1464 = vsel %vm1461, %v1450, %v1452
        %v1465 = vsel %vm1461, %v1452, %v1454
        %v1466 = vsel %vm1461, %v1454, %v1456
        %v1467 = vsel %vm1461, %v1456, %v1458
        %v1468 = vsel %vm1461, %v1458, %v1460
        %1476 = vst [vmem:[#allocation3 + $0x2a0] sm:$0xf0] %v1462
        %1477 = vst [vmem:[#allocation3 + $0x2a8] sm:$0xf0] %v1463
        %1478 = vst [vmem:[#allocation3 + $0x2b0] sm:$0xf0] %v1464
        %1479 = vst [vmem:[#allocation3 + $0x2b8] sm:$0xf0] %v1465
        %1480 = vst [vmem:[#allocation3 + $0x2c0] sm:$0xf0] %v1466
        %1481 = vst [vmem:[#allocation3 + $0x2c8] sm:$0xf0] %v1467
        %1482 = vst [vmem:[#allocation3 + $0x2d0] sm:$0xf0] %v1468
        %v1483 = vld [vmem:[#allocation2 + $0x4] sm:$0xff]
        %v1484 = vld [vmem:[#allocation2 + $0xc] sm:$0xff]
        %v1485 = vld [vmem:[#allocation2 + $0x14] sm:$0xff]
        %v1486 = vld [vmem:[#allocation2 + $0x1c] sm:$0xff]
        %v1491 = vcombine.high %v1483, %v1483
        %v1492 = vcombine.high %v1484, %v1484
        %v1493 = vcombine.high %v1485, %v1485
        %v1494 = vcombine.high %v1486, %v1486
        %1495 = vrot.lane.b32.xlu0 %v1483, 34
        %v1496 = vpop.permute.xlu0 %1495
        %1497 = vrot.lane.b32.xlu0 %v1491, 34
        %v1498 = vpop.permute.xlu0 %1497
        %1499 = vrot.lane.b32.xlu0 %v1484, 34
        %v1500 = vpop.permute.xlu0 %1499
        %1501 = vrot.lane.b32.xlu0 %v1492, 34
        %v1502 = vpop.permute.xlu0 %1501
        %1503 = vrot.lane.b32.xlu0 %v1485, 34
        %v1504 = vpop.permute.xlu0 %1503
        %1505 = vrot.lane.b32.xlu0 %v1493, 34
        %v1506 = vpop.permute.xlu0 %1505
        %1507 = vrot.lane.b32.xlu0 %v1486, 34
        %v1508 = vpop.permute.xlu0 %1507
        %1509 = vrot.lane.b32.xlu0 %v1494, 34
        %v1510 = vpop.permute.xlu0 %1509
        %vm1511 = vcmask 277504
        %v1512 = vsel %vm1511, %v1496, %v1498
        %v1513 = vsel %vm1511, %v1498, %v1500
        %v1514 = vsel %vm1511, %v1500, %v1502
        %v1515 = vsel %vm1511, %v1502, %v1504
        %v1516 = vsel %vm1511, %v1504, %v1506
        %v1517 = vsel %vm1511, %v1506, %v1508
        %v1518 = vsel %vm1511, %v1508, %v1510
        %1526 = vst [vmem:[#allocation3 + $0x2d8] sm:$0xf] %v1512
        %1527 = vst [vmem:[#allocation3 + $0x2e0] sm:$0xf] %v1513
        %1528 = vst [vmem:[#allocation3 + $0x2e8] sm:$0xf] %v1514
        %1529 = vst [vmem:[#allocation3 + $0x2f0] sm:$0xf] %v1515
        %1530 = vst [vmem:[#allocation3 + $0x2f8] sm:$0xf] %v1516
        %1531 = vst [vmem:[#allocation3 + $0x300] sm:$0xf] %v1517
        %1532 = vst [vmem:[#allocation3 + $0x308] sm:$0xf] %v1518
        %v1533 = vld [vmem:[%s1] sm:$0xf]
        %v1534 = vld [vmem:[#allocation3] sm:$0xff]
        %v1535 = vld [vmem:[#allocation3 + $0x8] sm:$0xff]
        %v1536 = vld [vmem:[#allocation3 + $0x10] sm:$0xff]
        %v1537 = vld [vmem:[#allocation3 + $0x18] sm:$0xff]
        %v1538 = vld [vmem:[#allocation3 + $0x20] sm:$0xff]
        %v1539 = vld [vmem:[#allocation3 + $0x28] sm:$0xff]
        %v1540 = vld [vmem:[#allocation3 + $0x30] sm:$0xff]
        %v1541 = vld [vmem:[#allocation3 + $0x38] sm:$0xff]
        %v1542 = vld [vmem:[#allocation3 + $0x40] sm:$0xff]
        %v1543 = vld [vmem:[#allocation3 + $0x48] sm:$0xff]
        %v1544 = vld [vmem:[#allocation3 + $0x50] sm:$0xff]
        %v1545 = vld [vmem:[#allocation3 + $0x58] sm:$0xff]
        %v1546 = vld [vmem:[#allocation3 + $0x60] sm:$0xff]
        %v1547 = vld [vmem:[#allocation3 + $0x68] sm:$0xff]
        %v1548 = vld [vmem:[#allocation3 + $0x70] sm:$0xff]
        %v1549 = vld [vmem:[#allocation3 + $0x78] sm:$0xff]
        %v1550 = vld [vmem:[#allocation3 + $0x80] sm:$0xff]
        %v1551 = vld [vmem:[#allocation3 + $0x88] sm:$0xff]
        %v1552 = vld [vmem:[#allocation3 + $0x90] sm:$0xff]
        %v1553 = vld [vmem:[#allocation3 + $0x98] sm:$0xff]
        %v1554 = vld [vmem:[#allocation3 + $0xa0] sm:$0xff]
        %v1555 = vld [vmem:[#allocation3 + $0xa8] sm:$0xff]
        %v1556 = vld [vmem:[#allocation3 + $0xb0] sm:$0xff]
        %v1557 = vld [vmem:[#allocation3 + $0xb8] sm:$0xff]
        %v1558 = vld [vmem:[#allocation3 + $0xc0] sm:$0xff]
        %v1559 = vld [vmem:[#allocation3 + $0xc8] sm:$0xff]
        %v1560 = vld [vmem:[#allocation3 + $0xd0] sm:$0xff]
        %v1561 = vld [vmem:[#allocation3 + $0xd8] sm:$0xff]
        %v1562 = vld [vmem:[#allocation3 + $0xe0] sm:$0xff]
        %v1563 = vld [vmem:[#allocation3 + $0xe8] sm:$0xff]
        %v1564 = vld [vmem:[#allocation3 + $0xf0] sm:$0xff]
        %v1565 = vld [vmem:[#allocation3 + $0xf8] sm:$0xff]
        %v1566 = vld [vmem:[#allocation3 + $0x100] sm:$0xff]
        %v1567 = vld [vmem:[#allocation3 + $0x108] sm:$0xff]
        %v1568 = vld [vmem:[#allocation3 + $0x110] sm:$0xff]
        %v1569 = vld [vmem:[#allocation3 + $0x118] sm:$0xff]
        %v1570 = vld [vmem:[#allocation3 + $0x120] sm:$0xff]
        %v1571 = vld [vmem:[#allocation3 + $0x128] sm:$0xff]
        %v1572 = vld [vmem:[#allocation3 + $0x130] sm:$0xff]
        %v1573 = vld [vmem:[#allocation3 + $0x138] sm:$0xff]
        %v1574 = vld [vmem:[#allocation3 + $0x140] sm:$0xff]
        %v1575 = vld [vmem:[#allocation3 + $0x148] sm:$0xff]
        %v1576 = vld [vmem:[#allocation3 + $0x150] sm:$0xff]
        %v1577 = vld [vmem:[#allocation3 + $0x158] sm:$0xff]
        %v1578 = vld [vmem:[#allocation3 + $0x160] sm:$0xff]
        %v1579 = vld [vmem:[#allocation3 + $0x168] sm:$0xff]
        %v1580 = vld [vmem:[#allocation3 + $0x170] sm:$0xff]
        %v1581 = vld [vmem:[#allocation3 + $0x178] sm:$0xff]
        %v1582 = vld [vmem:[#allocation3 + $0x180] sm:$0xff]
        %v1583 = vld [vmem:[#allocation3 + $0x188] sm:$0xff]
        %v1584 = vld [vmem:[#allocation3 + $0x190] sm:$0xff]
        %v1585 = vld [vmem:[#allocation3 + $0x198] sm:$0xff]
        %v1586 = vld [vmem:[#allocation3 + $0x1a0] sm:$0xff]
        %v1587 = vld [vmem:[#allocation3 + $0x1a8] sm:$0xff]
        %v1588 = vld [vmem:[#allocation3 + $0x1b0] sm:$0xff]
        %v1589 = vld [vmem:[#allocation3 + $0x1b8] sm:$0xff]
        %v1590 = vld [vmem:[#allocation3 + $0x1c0] sm:$0xff]
        %v1591 = vld [vmem:[#allocation3 + $0x1c8] sm:$0xff]
        %v1592 = vld [vmem:[#allocation3 + $0x1d0] sm:$0xff]
        %v1593 = vld [vmem:[#allocation3 + $0x1d8] sm:$0xff]
        %v1594 = vld [vmem:[#allocation3 + $0x1e0] sm:$0xff]
        %v1595 = vld [vmem:[#allocation3 + $0x1e8] sm:$0xff]
        %v1596 = vld [vmem:[#allocation3 + $0x1f0] sm:$0xff]
        %v1597 = vld [vmem:[#allocation3 + $0x1f8] sm:$0xff]
        %v1598 = vld [vmem:[#allocation3 + $0x200] sm:$0xff]
        %v1599 = vld [vmem:[#allocation3 + $0x208] sm:$0xff]
        %v1600 = vld [vmem:[#allocation3 + $0x210] sm:$0xff]
        %v1601 = vld [vmem:[#allocation3 + $0x218] sm:$0xff]
        %v1602 = vld [vmem:[#allocation3 + $0x220] sm:$0xff]
        %v1603 = vld [vmem:[#allocation3 + $0x228] sm:$0xff]
        %v1604 = vld [vmem:[#allocation3 + $0x230] sm:$0xff]
        %v1605 = vld [vmem:[#allocation3 + $0x238] sm:$0xff]
        %v1606 = vld [vmem:[#allocation3 + $0x240] sm:$0xff]
        %v1607 = vld [vmem:[#allocation3 + $0x248] sm:$0xff]
        %v1608 = vld [vmem:[#allocation3 + $0x250] sm:$0xff]
        %v1609 = vld [vmem:[#allocation3 + $0x258] sm:$0xff]
        %v1610 = vld [vmem:[#allocation3 + $0x260] sm:$0xff]
        %v1611 = vld [vmem:[#allocation3 + $0x268] sm:$0xff]
        %v1612 = vld [vmem:[#allocation3 + $0x270] sm:$0xff]
        %v1613 = vld [vmem:[#allocation3 + $0x278] sm:$0xff]
        %v1614 = vld [vmem:[#allocation3 + $0x280] sm:$0xff]
        %v1615 = vld [vmem:[#allocation3 + $0x288] sm:$0xff]
        %v1616 = vld [vmem:[#allocation3 + $0x290] sm:$0xff]
        %v1617 = vld [vmem:[#allocation3 + $0x298] sm:$0xff]
        %v1618 = vld [vmem:[#allocation3 + $0x2a0] sm:$0xff]
        %v1619 = vld [vmem:[#allocation3 + $0x2a8] sm:$0xff]
        %v1620 = vld [vmem:[#allocation3 + $0x2b0] sm:$0xff]
        %v1621 = vld [vmem:[#allocation3 + $0x2b8] sm:$0xff]
        %v1622 = vld [vmem:[#allocation3 + $0x2c0] sm:$0xff]
        %v1623 = vld [vmem:[#allocation3 + $0x2c8] sm:$0xff]
        %v1624 = vld [vmem:[#allocation3 + $0x2d0] sm:$0xff]
        %v1625 = vld [vmem:[#allocation3 + $0x2d8] sm:$0xf]
        %v1626 = vld [vmem:[#allocation3 + $0x2e0] sm:$0xf]
        %v1627 = vld [vmem:[#allocation3 + $0x2e8] sm:$0xf]
        %v1628 = vld [vmem:[#allocation3 + $0x2f0] sm:$0xf]
        %v1629 = vld [vmem:[#allocation3 + $0x2f8] sm:$0xf]
        %v1630 = vld [vmem:[#allocation3 + $0x300] sm:$0xf]
        %v1631 = vld [vmem:[#allocation3 + $0x308] sm:$0xf]
        %v1632 = vpack.c.bf16 %v1541, %v1534
        %v1633 = vpack.c.bf16 %v1542, %v1535
        %v1634 = vpack.c.bf16 %v1543, %v1536
        %v1635 = vpack.c.bf16 %v1544, %v1537
        %v1636 = vpack.c.bf16 %v1545, %v1538
        %v1637 = vpack.c.bf16 %v1546, %v1539
        %v1638 = vpack.c.bf16 %v1547, %v1540
        %v1639 = vpack.c.bf16 %v1555, %v1548
        %v1640 = vpack.c.bf16 %v1556, %v1549
        %v1641 = vpack.c.bf16 %v1557, %v1550
        %v1642 = vpack.c.bf16 %v1558, %v1551
        %v1643 = vpack.c.bf16 %v1559, %v1552
        %v1644 = vpack.c.bf16 %v1560, %v1553
        %v1645 = vpack.c.bf16 %v1561, %v1554
        %v1646 = vpack.c.bf16 %v1569, %v1562
        %v1647 = vpack.c.bf16 %v1570, %v1563
        %v1648 = vpack.c.bf16 %v1571, %v1564
        %v1649 = vpack.c.bf16 %v1572, %v1565
        %v1650 = vpack.c.bf16 %v1573, %v1566
        %v1651 = vpack.c.bf16 %v1574, %v1567
        %v1652 = vpack.c.bf16 %v1575, %v1568
        %v1653 = vpack.c.bf16 %v1583, %v1576
        %v1654 = vpack.c.bf16 %v1584, %v1577
        %v1655 = vpack.c.bf16 %v1585, %v1578
        %v1656 = vpack.c.bf16 %v1586, %v1579
        %v1657 = vpack.c.bf16 %v1587, %v1580
        %v1658 = vpack.c.bf16 %v1588, %v1581
        %v1659 = vpack.c.bf16 %v1589, %v1582
        %v1660 = vpack.c.bf16 %v1597, %v1590
        %v1661 = vpack.c.bf16 %v1598, %v1591
        %v1662 = vpack.c.bf16 %v1599, %v1592
        %v1663 = vpack.c.bf16 %v1600, %v1593
        %v1664 = vpack.c.bf16 %v1601, %v1594
        %v1665 = vpack.c.bf16 %v1602, %v1595
        %v1666 = vpack.c.bf16 %v1603, %v1596
        %v1667 = vpack.c.bf16 %v1611, %v1604
        %v1668 = vpack.c.bf16 %v1612, %v1605
        %v1669 = vpack.c.bf16 %v1613, %v1606
        %v1670 = vpack.c.bf16 %v1614, %v1607
        %v1671 = vpack.c.bf16 %v1615, %v1608
        %v1672 = vpack.c.bf16 %v1616, %v1609
        %v1673 = vpack.c.bf16 %v1617, %v1610
        %v1674 = vpack.c.bf16 %v1625, %v1618
        %v1675 = vpack.c.bf16 %v1626, %v1619
        %v1676 = vpack.c.bf16 %v1627, %v1620
        %v1677 = vpack.c.bf16 %v1628, %v1621
        %v1678 = vpack.c.bf16 %v1629, %v1622
        %v1679 = vpack.c.bf16 %v1630, %v1623
        %v1680 = vpack.c.bf16 %v1631, %v1624
        %v1681 = vld [vmem:[%s2] sm:$0xff]
        %1683 = vset.pattern.permute.xlu0 0
        %1684 = vperm.xlu0 %1683, %v1681
        %v1685 = vpop.permute.xlu0 %1684
        %v1688 = vsel %vm511, %v1533, 0
        %vm1690 = vcmask 1045504
        %v1692 = vsel %vm1690, %v1674, 0
        %v1695 = vsel %vm1690, %v1675, 0
        %v1698 = vsel %vm1690, %v1676, 0
        %v1701 = vsel %vm1690, %v1677, 0
        %v1704 = vsel %vm1690, %v1678, 0
        %v1707 = vsel %vm1690, %v1679, 0
        %v1710 = vsel %vm1690, %v1680, 0
        %1712 = vmatprep.subr.bf16.mxu0 %v1633
        %1713 = vmatpush1.bf16.msra.mxu0 %v1632
        %1714 = vmatprep.subr.bf16.mxu0 %v1640
        %1715 = vmatpush1.bf16.msra.mxu0 %v1639
        %1716 = vmatprep.subr.bf16.mxu0 %v1647
        %1717 = vmatpush1.bf16.msra.mxu0 %v1646
        %1718 = vmatprep.subr.bf16.mxu0 %v1654
        %1719 = vmatpush1.bf16.msra.mxu0 %v1653
        %1720 = vmatprep.subr.bf16.mxu0 %v1661
        %1721 = vmatpush1.bf16.msra.mxu0 %v1660
        %1722 = vmatprep.subr.bf16.mxu0 %v1668
        %1723 = vmatpush1.bf16.msra.mxu0 %v1667
        %1724 = vmatprep.subr.bf16.mxu0 %v1695
        %1725 = vmatpush1.bf16.msra.mxu0 %v1692
        %1726 = vmatprep.subr.bf16.mxu0 0
        %1727 = vmatpush1.bf16.msra.mxu0 0
        %1728 = vmatprep.subr.bf16.mxu0 0
        %1729 = vmatpush1.bf16.msra.mxu0 0
        %1730 = vmatprep.subr.bf16.mxu0 0
        %1731 = vmatpush1.bf16.msra.mxu0 0
        %1732 = vmatprep.subr.bf16.mxu0 0
        %1733 = vmatpush1.bf16.msra.mxu0 0
        %1734 = vmatprep.subr.bf16.mxu0 0
        %1735 = vmatpush1.bf16.msra.mxu0 0
        %1736 = vmatprep.subr.bf16.mxu0 0
        %1737 = vmatpush1.bf16.msra.mxu0 0
        %1738 = vmatprep.subr.bf16.mxu0 0
        %1739 = vmatpush1.bf16.msra.mxu0 0
        %1740 = vmatprep.subr.bf16.mxu0 0
        %1741 = vmatpush1.bf16.msra.mxu0 0
        %1742 = vmatprep.subr.bf16.mxu0 0
        %1743 = vmatpush1.bf16.msra.mxu0 0
        %1744 = vmatprep.mubr.bf16.mxu0 0
        %1745 = vmatmul.mubr.bf16.gmra.mrb[0].mxu0 %v1688
        %v1746 = vpop.f32.mrb[0].mxu0
        %v1747 = vadd.f32 %v1685, %v1746
        %v1748 = vpop.f32.mrb[0].mxu0
        %v1749 = vadd.f32 %v1685, %v1748
        %v1750 = vpop.f32.mrb[0].mxu0
        %v1751 = vpop.f32.mrb[0].mxu0
        %1752 = vdwg.mxu0
        %1753 = vmatprep.subr.bf16.mxu0 %v1635
        %1754 = vmatpush1.bf16.msra.mxu0 %v1634
        %1755 = vmatprep.subr.bf16.mxu0 %v1642
        %1756 = vmatpush1.bf16.msra.mxu0 %v1641
        %1757 = vmatprep.subr.bf16.mxu0 %v1649
        %1758 = vmatpush1.bf16.msra.mxu0 %v1648
        %1759 = vmatprep.subr.bf16.mxu0 %v1656
        %1760 = vmatpush1.bf16.msra.mxu0 %v1655
        %1761 = vmatprep.subr.bf16.mxu0 %v1663
        %1762 = vmatpush1.bf16.msra.mxu0 %v1662
        %1763 = vmatprep.subr.bf16.mxu0 %v1670
        %1764 = vmatpush1.bf16.msra.mxu0 %v1669
        %1765 = vmatprep.subr.bf16.mxu0 %v1701
        %1766 = vmatpush1.bf16.msra.mxu0 %v1698
        %1767 = vmatprep.subr.bf16.mxu0 0
        %1768 = vmatpush1.bf16.msra.mxu0 0
        %1769 = vmatprep.subr.bf16.mxu0 0
        %1770 = vmatpush1.bf16.msra.mxu0 0
        %1771 = vmatprep.subr.bf16.mxu0 0
        %1772 = vmatpush1.bf16.msra.mxu0 0
        %1773 = vmatprep.subr.bf16.mxu0 0
        %1774 = vmatpush1.bf16.msra.mxu0 0
        %1775 = vmatprep.subr.bf16.mxu0 0
        %1776 = vmatpush1.bf16.msra.mxu0 0
        %1777 = vmatprep.subr.bf16.mxu0 0
        %1778 = vmatpush1.bf16.msra.mxu0 0
        %1779 = vmatprep.subr.bf16.mxu0 0
        %1780 = vmatpush1.bf16.msra.mxu0 0
        %1781 = vmatprep.subr.bf16.mxu0 0
        %1782 = vmatpush1.bf16.msra.mxu0 0
        %1783 = vmatprep.subr.bf16.mxu0 0
        %1784 = vmatpush1.bf16.msra.mxu0 0
        %1785 = vmatprep.mubr.bf16.mxu0 0
        %1786 = vmatmul.mubr.bf16.gmra.mrb[0].mxu0 %v1688
        %v1787 = vpop.f32.mrb[0].mxu0
        %v1788 = vadd.f32 %v1685, %v1787
        %v1789 = vpop.f32.mrb[0].mxu0
        %v1790 = vadd.f32 %v1685, %v1789
        %v1791 = vpop.f32.mrb[0].mxu0
        %v1792 = vpop.f32.mrb[0].mxu0
        %1793 = vdwg.mxu0
        %1794 = vmatprep.subr.bf16.mxu0 %v1637
        %1795 = vmatpush1.bf16.msra.mxu0 %v1636
        %1796 = vmatprep.subr.bf16.mxu0 %v1644
        %1797 = vmatpush1.bf16.msra.mxu0 %v1643
        %1798 = vmatprep.subr.bf16.mxu0 %v1651
        %1799 = vmatpush1.bf16.msra.mxu0 %v1650
        %1800 = vmatprep.subr.bf16.mxu0 %v1658
        %1801 = vmatpush1.bf16.msra.mxu0 %v1657
        %1802 = vmatprep.subr.bf16.mxu0 %v1665
        %1803 = vmatpush1.bf16.msra.mxu0 %v1664
        %1804 = vmatprep.subr.bf16.mxu0 %v1672
        %1805 = vmatpush1.bf16.msra.mxu0 %v1671
        %1806 = vmatprep.subr.bf16.mxu0 %v1707
        %1807 = vmatpush1.bf16.msra.mxu0 %v1704
        %1808 = vmatprep.subr.bf16.mxu0 0
        %1809 = vmatpush1.bf16.msra.mxu0 0
        %1810 = vmatprep.subr.bf16.mxu0 0
        %1811 = vmatpush1.bf16.msra.mxu0 0
        %1812 = vmatprep.subr.bf16.mxu0 0
        %1813 = vmatpush1.bf16.msra.mxu0 0
        %1814 = vmatprep.subr.bf16.mxu0 0
        %1815 = vmatpush1.bf16.msra.mxu0 0
        %1816 = vmatprep.subr.bf16.mxu0 0
        %1817 = vmatpush1.bf16.msra.mxu0 0
        %1818 = vmatprep.subr.bf16.mxu0 0
        %1819 = vmatpush1.bf16.msra.mxu0 0
        %1820 = vmatprep.subr.bf16.mxu0 0
        %1821 = vmatpush1.bf16.msra.mxu0 0
        %1822 = vmatprep.subr.bf16.mxu0 0
        %1823 = vmatpush1.bf16.msra.mxu0 0
        %1824 = vmatprep.subr.bf16.mxu0 0
        %1825 = vmatpush1.bf16.msra.mxu0 0
        %1826 = vmatprep.mubr.bf16.mxu0 0
        %1827 = vmatmul.mubr.bf16.gmra.mrb[0].mxu0 %v1688
        %v1828 = vpop.f32.mrb[0].mxu0
        %v1829 = vadd.f32 %v1685, %v1828
        %v1830 = vpop.f32.mrb[0].mxu0
        %v1831 = vadd.f32 %v1685, %v1830
        %v1832 = vpop.f32.mrb[0].mxu0
        %v1833 = vpop.f32.mrb[0].mxu0
        %1834 = vdwg.mxu0
        %1835 = vmatprep.subr.bf16.mxu0 0
        %1836 = vmatpush1.bf16.msra.mxu0 %v1638
        %1837 = vmatprep.subr.bf16.mxu0 0
        %1838 = vmatpush1.bf16.msra.mxu0 %v1645
        %1839 = vmatprep.subr.bf16.mxu0 0
        %1840 = vmatpush1.bf16.msra.mxu0 %v1652
        %1841 = vmatprep.subr.bf16.mxu0 0
        %1842 = vmatpush1.bf16.msra.mxu0 %v1659
        %1843 = vmatprep.subr.bf16.mxu0 0
        %1844 = vmatpush1.bf16.msra.mxu0 %v1666
        %1845 = vmatprep.subr.bf16.mxu0 0
        %1846 = vmatpush1.bf16.msra.mxu0 %v1673
        %1847 = vmatprep.subr.bf16.mxu0 0
        %1848 = vmatpush1.bf16.msra.mxu0 %v1710
        %1849 = vmatprep.subr.bf16.mxu0 0
        %1850 = vmatpush1.bf16.msra.mxu0 0
        %1851 = vmatprep.subr.bf16.mxu0 0
        %1852 = vmatpush1.bf16.msra.mxu0 0
        %1853 = vmatprep.subr.bf16.mxu0 0
        %1854 = vmatpush1.bf16.msra.mxu0 0
        %1855 = vmatprep.subr.bf16.mxu0 0
        %1856 = vmatpush1.bf16.msra.mxu0 0
        %1857 = vmatprep.subr.bf16.mxu0 0
        %1858 = vmatpush1.bf16.msra.mxu0 0
        %1859 = vmatprep.subr.bf16.mxu0 0
        %1860 = vmatpush1.bf16.msra.mxu0 0
        %1861 = vmatprep.subr.bf16.mxu0 0
        %1862 = vmatpush1.bf16.msra.mxu0 0
        %1863 = vmatprep.subr.bf16.mxu0 0
        %1864 = vmatpush1.bf16.msra.mxu0 0
        %1865 = vmatprep.subr.bf16.mxu0 0
        %1866 = vmatpush1.bf16.msra.mxu0 0
        %1867 = vmatprep.mubr.bf16.mxu0 0
        %1868 = vmatmul.mubr.bf16.gmra.mrb[0].mxu0 %v1688
        %v1869 = vpop.f32.mrb[0].mxu0
        %v1870 = vadd.f32 %v1685, %v1869
        %v1871 = vpop.f32.mrb[0].mxu0
        %v1872 = vpop.f32.mrb[0].mxu0
        %v1873 = vpop.f32.mrb[0].mxu0
        %1874 = vdwg.mxu0
        %1875 = vst [vmem:[%s186] sm:$0xff] %v1747
        %1876 = vst [vmem:[%s186 + $0x8] sm:$0xff] %v1749
        %1877 = vst [vmem:[%s186 + $0x10] sm:$0xff] %v1788
        %1878 = vst [vmem:[%s186 + $0x18] sm:$0xff] %v1790
        %1879 = vst [vmem:[%s186 + $0x20] sm:$0xff] %v1829
        %1880 = vst [vmem:[%s186 + $0x28] sm:$0xff] %v1831
        %1881 = vst [vmem:[%s186 + $0x30] sm:$0xff] %v1870
        %s1882 = sand.u32 %s96, 1
        %s1883 = scalar_lea.sflag [#allocation6], %s1882
        %s1884 = sand.u32 %s96, 1
        %s1885 = smul.addr %s1884, 56
        %s1886 = scalar_lea.vmem [#allocation7], %s1885
        // Predicated region
        $region37: #{tpu_custom_call.1} parent=31 // pred_check
          %p1887 = pneg %p106
        $region38: #{tpu_custom_call.1} parent=31 // pred_check_branch
          %1889 = sbr.rel (%p1887) target = $region40
        $region39: #{tpu_custom_call.1} parent=31 // pred_region
          %s1891 = ssub.s32 896, 896
          %1892 = vsyncadd %s1883, %s1891
          %s1893 = smul.addr %s20, 7
          %s1894 = smul.addr %s1893, 128
          %s1895 = scalar_lea.hbm %s3, %s1894
          %s1897 = sshll.u32 %s1886, 4
          %s1898 = int_to_ptr.vmem [resolvable:$true] %s1897
          %1900 = dma.vmem_to_hbm [thread:$0]  %s1898, 896, %s1895, %s1883
        $region40: #{tpu_custom_call.1} parent=31 // pred_fallthru
          _
      $region32: #{tpu_custom_call.1} parent=5 // pred_fallthru
        _
      %p1901 = scmp.le.s32.totalorder 2, %s15
      // Predicated region
      $region41: #{tpu_custom_call.1} parent=5 // pred_check
        %p1902 = pneg %p1901
      $region42: #{tpu_custom_call.1} parent=5 // pred_check_branch
        %1904 = sbr.rel (%p1902) target = $region44
      $region43: #{tpu_custom_call.1} parent=5 // pred_region
        %s1905 = ssub.s32 %s15, 2
        // Predicated region
        $region45: #{tpu_custom_call.1} parent=43 // pred_check
          %p1906 = pneg %p112
        $region46: #{tpu_custom_call.1} parent=43 // pred_check_branch
          %1908 = sbr.rel (%p1906) target = $region48
        $region47: #{tpu_custom_call.1} parent=43 // pred_region
          %s1909 = sand.u32 %s97, 1
          %s1910 = scalar_lea.sflag [#allocation6], %s1909
          %s1911 = sand.u32 %s97, 1
          %s1912 = smul.addr %s1911, 56
          %s1913 = scalar_lea.vmem [#allocation7], %s1912
          %1914 = dma.done %s1910, 896
        $region48: #{tpu_custom_call.1} parent=43 // pred_fallthru
          _
      $region44: #{tpu_custom_call.1} parent=5 // pred_fallthru
        _
    $region6: #{tpu_custom_call.1} parent=1 // loop_footer
      %s19 = sadd.s32 1, %s15
    $region7: #{tpu_custom_call.1} parent=1 // loop_footer_branch
      %14 = sbr.rel target = $region3
    $region8: #{tpu_custom_call.1} parent=1 // loop_exit
      _
    %1915 = vsyncpa [#allocation5], 1
    %s1916 = scalar_lea.sflag [#allocation5], 1
    %1917 = vsyncpa %s1916, 1
    %1918 = vsyncpa [#allocation6], 1
    %s1919 = scalar_lea.sflag [#allocation6], 1
    %1920 = vsyncpa %s1919, 1

</llo_original>
